<compile_context>
chip_gen: v6e
topology: v6e:2x2x1
jax: 0.10.0
libtpu: 0.0.40
codegen_flags: <defaults>
</compile_context>

<pallas_src>
import math

import jax
import jax.numpy as jnp
import numpy as np
from jax import lax
from jax.experimental import pallas as pl
from jax.experimental.pallas import tpu as pltpu

LN_EPS = 1e-5


def _silu(x):
    # x * sigmoid(x); the divide goes to the EUP approx reciprocal.
    return x * pl.reciprocal(1.0 + jnp.exp(-x), approx=True)


def _softplus(x):
    # numerically stable softplus
    return jnp.maximum(x, 0.0) + jnp.log(1.0 + jnp.exp(-jnp.abs(x)))


# ----------------------------------------------------------------------------
# Fused Block kernel factory
# ----------------------------------------------------------------------------
def _make_block_kernel(d_inner, d_state, d_conv, chunk_len, ts):
    pad = max(8, d_conv - 1)          # left-padding rows for the causal conv
    dcm1 = d_conv - 1
    num_sub = chunk_len // ts

    def kernel(hid_ref, res_ref, stin_ref,
               lnw_ref, lnb_ref,
               winx_ref, winz_ref, wconv_ref, bconv_ref,
               wxdt_ref, wxbc_ref, wdt_ref, bdt_ref,
               at_ref, dvec_ref, wout_ref,
               out_ref, resout_ref, stout_ref,
               xpad_s, xconv_s, dt_s, z_s, y_s, h_s, cctx_s):
        lc = pl.program_id(1)

        # ------------------ fused residual add + LayerNorm -------------------
        res = hid_ref[0] + res_ref[0]                      # (CL, D) f32
        resout_ref[0] = res
        mean = jnp.mean(res, axis=-1, keepdims=True)
        cen = res - mean
        var = jnp.mean(cen * cen, axis=-1, keepdims=True)
        hs = cen * lax.rsqrt(var + LN_EPS) * lnw_ref[...] + lnb_ref[...]
        hs_bf = hs.astype(jnp.bfloat16)

        # ------------------ per-sequence state init (first chunk) ------------
        @pl.when(lc == 0)
        def _():
            cctx_s[...] = jnp.zeros_like(cctx_s)           # conv left context
            h_s[...] = stin_ref[0]                         # SSM state (ds, di)

        # ------------------ in_proj: separate x / z MXU passes ----------------
        # (avoids the (CL, 2*d_inner) temporary + slice copies; z stays bf16)
        x = jnp.dot(hs_bf, winx_ref[...],
                    preferred_element_type=jnp.float32)    # (CL, di) f32
        z_s[...] = jnp.dot(hs_bf, winz_ref[...],
                           preferred_element_type=jnp.float32
                           ).astype(jnp.bfloat16)          # (CL, di) bf16

        # ------------------ causal depthwise conv1d + SiLU --------------------
        xpad_s[pl.ds(pad - dcm1, dcm1), :] = cctx_s[...]   # prev-chunk context
        xpad_s[pl.ds(pad, chunk_len), :] = x
        cctx_s[...] = x[chunk_len - dcm1:, :]              # context for next chunk
        acc = jnp.broadcast_to(bconv_ref[...], (chunk_len, d_inner))
        for j in range(d_conv):
            tap = wconv_ref[d_conv - 1 - j: d_conv - j, :]          # (1, di)
            acc = acc + xpad_s[pl.ds(pad - j, chunk_len), :] * tap  # x[t-j]
        xc = _silu(acc)
        xconv_s[...] = xc
        xc_bf = xc.astype(jnp.bfloat16)

        # ------------------ dt path: x_proj(dt) + dt_proj + softplus ----------
        dt_small = jnp.dot(xc_bf, wxdt_ref[...],
                           preferred_element_type=jnp.float32)      # (CL, dr)
        dt_s[...] = _softplus(
            jnp.dot(dt_small, wdt_ref[...], preferred_element_type=jnp.float32)
            + bdt_ref[...])                                          # (CL, di)

        a_T = at_ref[...]                                   # (ds, di)  = A^T
        d_vec = dvec_ref[...]                               # (1, di)
        wxbc = wxbc_ref[...]                                # (2*ds, di) bf16

        # ------------------ selective scan (serial over time) -----------------
        def sub_body(s, carry):
            t0 = pl.multiple_of(s * ts, ts)
            dt_blk = dt_s[pl.ds(t0, ts), :]                # (ts, di)
            x_blk = xconv_s[pl.ds(t0, ts), :]              # (ts, di)
            # B|C for this sub-block, d_state already on sublanes: one small
            # MXU pass (A·Bᵀ form), off the serial chain.
            bct_blk = lax.dot_general(
                wxbc, x_blk.astype(jnp.bfloat16),
                dimension_numbers=(((1,), (1,)), ((), ())),
                preferred_element_type=jnp.float32)        # (2*ds, ts)
            dtx_blk = dt_blk * x_blk                       # (ts, di)

            # batched precompute of dA / dBx (EUP/VALU work independent of h)
            dA = []
            dBx = []
            for j in range(ts):                            # static unroll
                dA.append(jnp.exp(dt_blk[j:j + 1, :] * a_T))             # (ds, di)
                dBx.append(dtx_blk[j:j + 1, :] * bct_blk[:d_state, j:j + 1])

            # serial recurrence: pure VALU fma chain
            h = h_s[...]                                   # (ds, di)
            hs_steps = []
            for j in range(ts):
                h = dA[j] * h + dBx[j]
                hs_steps.append(h)
            h_s[...] = h

            # deferred C projection + D skip (off the serial chain)
            rows = []
            for j in range(ts):
                rows.append(jnp.sum(hs_steps[j] * bct_blk[d_state:, j:j + 1],
                                    axis=0, keepdims=True))
            y_s[pl.ds(t0, ts), :] = jnp.concatenate(rows, axis=0) + d_vec * x_blk
            return carry

        lax.fori_loop(0, num_sub, sub_body, 0)

        # explicit state write every chunk; last chunk's value is what lands in HBM
        stout_ref[0] = h_s[...]

        # ------------------ gate + out_proj -----------------------------------
        y = y_s[...] * _silu(z_s[...].astype(jnp.float32))
        out_ref[0] = jnp.dot(y.astype(jnp.bfloat16), wout_ref[...],
                             preferred_element_type=jnp.float32)

    return kernel


# ----------------------------------------------------------------------------
# Python-side Block wrapper
# ----------------------------------------------------------------------------
class PallasMambaBlock:
    def __init__(self, d_model, d_state=16, d_conv=4, expand=2,
                 key=jax.random.PRNGKey(0)):
        self.d_model = d_model
        self.d_state = d_state
        self.d_conv = d_conv
        self.d_inner = expand * d_model
        self.dt_rank = math.ceil(d_model / 16)
        f32, bf16 = jnp.float32, jnp.bfloat16
        ks = jax.random.split(key, 8)

        # LayerNorm (nn.LayerNorm defaults)
        self.ln_w = jnp.ones((d_model,), f32)
        self.ln_b = jnp.zeros((d_model,), f32)

        # Mamba mixer params (PyTorch Linear layout: (out_features, in_features)).
        # Matmul weights are pre-rounded to bf16 so kernel and reference agree.
        self.w_in = (0.02 * jax.random.normal(
            ks[0], (2 * self.d_inner, d_model), f32)).astype(bf16).astype(f32)
        self.conv_w = 0.2 * jax.random.normal(ks[1], (self.d_inner, self.d_conv), f32)
        self.conv_b = 0.1 * jax.random.normal(ks[2], (self.d_inner,), f32)
        self.w_x = (0.1 * jax.random.normal(
            ks[3], (self.dt_rank + 2 * d_state, self.d_inner), f32)
        ).astype(bf16).astype(f32)
        self.w_dt = 0.5 * jax.random.normal(ks[4], (self.d_inner, self.dt_rank), f32)
        dt_init = jnp.exp(
            jax.random.uniform(ks[5], (self.d_inner,), f32)
            * (math.log(0.1) - math.log(0.001)) + math.log(0.001))
        self.b_dt = dt_init + jnp.log(-jnp.expm1(-dt_init))   # inverse softplus
        self.a_log = jnp.log(jnp.broadcast_to(
            jnp.arange(1, d_state + 1, dtype=f32), (self.d_inner, d_state)))
        self.d_param = jnp.ones((self.d_inner,), f32)
        self.w_out = (0.02 * jax.random.normal(
            ks[6], (d_model, self.d_inner), f32)).astype(bf16).astype(f32)

    def __call__(self, hidden_states, residual=None, in_state=None):
        B, L, D = hidden_states.shape
        if residual is None:
            residual = jnp.zeros_like(hidden_states)
        if in_state is None:
            in_state = jnp.zeros((B, self.d_inner, self.d_state), jnp.float32)

        di, ds_, dr, dc = self.d_inner, self.d_state, self.dt_rank, self.d_conv
        f32, bf16 = jnp.float32, jnp.bfloat16

        # Kernel-layout weights (matmul operands in bf16, f32 accumulate).
        lnw = self.ln_w[None, :]
        lnb = self.ln_b[None, :]
        winx_t = self.w_in[:di, :].T.astype(bf16)          # (D, di)
        winz_t = self.w_in[di:, :].T.astype(bf16)          # (D, di)
        wconv_t = self.conv_w.T.astype(f32)                # (dc, di)
        bconv = self.conv_b[None, :]
        wxdt_t = self.w_x[:dr, :].T.astype(bf16)           # (di, dr)
        wxbc = self.w_x[dr:, :].astype(bf16)               # (2*ds, di)
        wdt_t = self.w_dt.T.astype(f32)                    # (dr, di)
        bdt = self.b_dt[None, :]
        a_t = (-jnp.exp(self.a_log)).T.astype(f32)         # (ds, di)
        dvec = self.d_param[None, :]
        wout_t = self.w_out.T.astype(bf16)                 # (di, D)
        weights = (lnw, lnb, winx_t, winz_t, wconv_t, bconv, wxdt_t, wxbc,
                   wdt_t, bdt, a_t, dvec, wout_t)

        # ---------------- VMEM budget from actual chip capacity ---------------
        try:
            vmem_cap = int(pltpu.get_tpu_info().vmem_capacity_bytes)
        except Exception:                                   # interpret / unknown chip
            vmem_cap = 64 * 1024 * 1024
        budget = int(vmem_cap * 0.85)

        def _nb(shape, itemsize=4):
            return int(np.prod(shape)) * itemsize

        def _vmem_estimate(cl, ts):
            est = 4 * 2 * _nb((1, cl, D))                   # hid/res + out/res_out (2 bufs)
            est += 2 * 2 * _nb((1, ds_, di))                # state in/out
            est += 2 * sum(int(w.size) * w.dtype.itemsize for w in weights)
            est += (_nb((cl + 8, di)) + 3 * _nb((cl, di)) + _nb((cl, di), 2)
                    + _nb((ds_, di)) + _nb((dc - 1, di)))   # scratches
            est += 3 * ts * _nb((ds_, di))                  # dA/dBx/h unrolled temps
            est += 2 * _nb((cl, di))                        # misc compiler temps
            return int(est * 1.25)

        # L-chunking: largest chunk (and sub-block) whose footprint fits VMEM.
        cl, ts = None, None
        for cand in (1024, 512, 256, 128, 64, 32, 16, 8):
            if L % cand == 0:
                ts_c = next(t for t in (16, 8, 4, 2, 1) if cand % t == 0)
                if _vmem_estimate(cand, ts_c) <= budget:
                    cl, ts = cand, ts_c
                    break
        if cl is None:
            cl = L
            ts = next(t for t in (16, 8, 4, 2, 1) if cl % t == 0)
        n_chunks = L // cl
        vmem_limit = int(min(budget, max(32 * 1024 * 1024, _vmem_estimate(cl, ts))))

        # TODO(synk): the tiny (d_inner,d_state) state transposes stay host-side.
        st_t = jnp.transpose(in_state, (0, 2, 1))          # (B, ds, di)

        kernel = _make_block_kernel(di, ds_, dc, cl, ts)

        def cmap(b, l):
            return (b, l, 0)

        def smap(b, l):
            return (b, 0, 0)

        def wspec(a):
            nd = a.ndim
            return pl.BlockSpec(a.shape, lambda b, l, _n=nd: (0,) * _n)

        out, res_out, st_out_t = pl.pallas_call(
            kernel,
            out_shape=(jax.ShapeDtypeStruct((B, L, D), f32),
                       jax.ShapeDtypeStruct((B, L, D), f32),
                       jax.ShapeDtypeStruct((B, ds_, di), f32)),
            grid=(B, n_chunks),
            in_specs=[pl.BlockSpec((1, cl, D), cmap),
                      pl.BlockSpec((1, cl, D), cmap),
                      pl.BlockSpec((1, ds_, di), smap)]
                     + [wspec(w) for w in weights],
            out_specs=(pl.BlockSpec((1, cl, D), cmap),
                       pl.BlockSpec((1, cl, D), cmap),
                       pl.BlockSpec((1, ds_, di), smap)),
            scratch_shapes=[
                pltpu.VMEM((cl + max(8, dc - 1), di), f32),   # xpad_s
                pltpu.VMEM((cl, di), f32),                    # xconv_s
                pltpu.VMEM((cl, di), f32),                    # dt_s
                pltpu.VMEM((cl, di), jnp.bfloat16),           # z_s (bf16)
                pltpu.VMEM((cl, di), f32),                    # y_s
                pltpu.VMEM((ds_, di), f32),                   # h_s (carried)
                pltpu.VMEM((dc - 1, di), f32),                # conv context (carried)
            ],
            compiler_params=pltpu.CompilerParams(
                dimension_semantics=("parallel", "arbitrary"),
                vmem_limit_bytes=vmem_limit),
        )(hidden_states, residual, st_t, *weights)

        return out, res_out, jnp.transpose(st_out_t, (0, 2, 1))


# ----------------------------------------------------------------------------
# Pure-JAX reference (mirrors the PyTorch Block + Mamba forward)
# ----------------------------------------------------------------------------
def reference_block(blk, hidden, residual, in_state):
    res = hidden + residual
    mean = jnp.mean(res, axis=-1, keepdims=True)
    var = jnp.mean((res - mean) ** 2, axis=-1, keepdims=True)
    hs = (res - mean) / jnp.sqrt(var + LN_EPS) * blk.ln_w + blk.ln_b

    di, ds_, dc, dr = blk.d_inner, blk.d_state, blk.d_conv, blk.dt_rank
    Bsz, L, _ = hs.shape
    x = hs @ blk.w_in[:di, :].T
    z = hs @ blk.w_in[di:, :].T
    xpad = jnp.pad(x, ((0, 0), (dc - 1, 0), (0, 0)))
    xc = blk.conv_b[None, None, :] + sum(
        blk.conv_w[:, k][None, None, :] * xpad[:, k:k + L, :] for k in range(dc))
    xc = xc * jax.nn.sigmoid(xc)

    dt = jax.nn.softplus(xc @ blk.w_x[:dr, :].T @ blk.w_dt.T + blk.b_dt)
    Bm = xc @ blk.w_x[dr:dr + ds_, :].T
    Cm = xc @ blk.w_x[dr + ds_:, :].T
    A = -jnp.exp(blk.a_log)

    h = in_state
    ys = []
    for t in range(L):
        dA = jnp.exp(dt[:, t, :, None] * A[None, :, :])
        dBx = (dt[:, t, :] * xc[:, t, :])[:, :, None] * Bm[:, t, None, :]
        h = dA * h + dBx
        ys.append(jnp.sum(h * Cm[:, t, None, :], axis=-1) + blk.d_param * xc[:, t, :])
    y = jnp.stack(ys, axis=1) * (z * jax.nn.sigmoid(z))
    out = y @ blk.w_out.T
    return out, res, h


if __name__ == "__main__":
    B, L, D = 2, 8, 32
    key = jax.random.PRNGKey(0)
    k_hid, k_res, k_state, k_params = jax.random.split(key, 4)

    block = PallasMambaBlock(D, key=k_params)
    hidden = jax.random.normal(k_hid, (B, L, D), jnp.float32)
    residual = jax.random.normal(k_res, (B, L, D), jnp.float32)
    in_state = 0.1 * jax.random.normal(
        k_state, (B, block.d_inner, block.d_state), jnp.float32)

    out, new_res, out_state = block(hidden, residual, in_state)
    jax.block_until_ready((out, new_res, out_state))

    ref_out, ref_res, ref_state = reference_block(block, hidden, residual, in_state)
    np.testing.assert_allclose(np.asarray(out), np.asarray(ref_out), rtol=2e-2, atol=2e-2)
    np.testing.assert_allclose(np.asarray(new_res), np.asarray(ref_res), rtol=2e-2, atol=2e-2)
    np.testing.assert_allclose(np.asarray(out_state), np.asarray(ref_state), rtol=2e-2, atol=2e-2)

    print("KERNEL_OK")
</pallas_src>

<mosaic_0001>
module attributes {stable_mosaic.version = 11 : i64} {
  func.func @kernel(%arg0: i32, %arg1: i32, %arg2: memref<1x8x32xf32, #tpu.memory_space<vmem>>, %arg3: memref<1x8x32xf32, #tpu.memory_space<vmem>>, %arg4: memref<1x16x64xf32, #tpu.memory_space<vmem>>, %arg5: memref<1x32xf32, #tpu.memory_space<vmem>>, %arg6: memref<1x32xf32, #tpu.memory_space<vmem>>, %arg7: memref<32x64xbf16, #tpu.memory_space<vmem>>, %arg8: memref<32x64xbf16, #tpu.memory_space<vmem>>, %arg9: memref<4x64xf32, #tpu.memory_space<vmem>>, %arg10: memref<1x64xf32, #tpu.memory_space<vmem>>, %arg11: memref<64x2xbf16, #tpu.memory_space<vmem>>, %arg12: memref<32x64xbf16, #tpu.memory_space<vmem>>, %arg13: memref<2x64xf32, #tpu.memory_space<vmem>>, %arg14: memref<1x64xf32, #tpu.memory_space<vmem>>, %arg15: memref<16x64xf32, #tpu.memory_space<vmem>>, %arg16: memref<1x64xf32, #tpu.memory_space<vmem>>, %arg17: memref<64x32xbf16, #tpu.memory_space<vmem>>, %arg18: memref<1x8x32xf32, #tpu.memory_space<vmem>>, %arg19: memref<1x8x32xf32, #tpu.memory_space<vmem>>, %arg20: memref<1x16x64xf32, #tpu.memory_space<vmem>>, %arg21: memref<16x64xf32, #tpu.memory_space<vmem>>, %arg22: memref<8x64xf32, #tpu.memory_space<vmem>>, %arg23: memref<8x64xf32, #tpu.memory_space<vmem>>, %arg24: memref<8x64xbf16, #tpu.memory_space<vmem>>, %arg25: memref<8x64xf32, #tpu.memory_space<vmem>>, %arg26: memref<16x64xf32, #tpu.memory_space<vmem>>, %arg27: memref<3x64xf32, #tpu.memory_space<vmem>>) attributes {dimension_semantics = [#tpu.dimension_semantics<parallel>, #tpu.dimension_semantics<arbitrary>], iteration_bounds = array<i64: 2, 1>, scalar_prefetch = 0 : i64, scratch_operands = 7 : i64, tpu.core_type = #tpu.core_type<tc>, window_params = [{transform_indices = @transform_0, window_bounds = array<i64: 1, 8, 32>}, {transform_indices = @transform_1, window_bounds = array<i64: 1, 8, 32>}, {transform_indices = @transform_2, window_bounds = array<i64: 1, 16, 64>}, {pipeline_mode = #tpu.pipeline_mode<synchronous>, transform_indices = @transform_3, window_bounds = array<i64: 1, 32>}, {pipeline_mode = #tpu.pipeline_mode<synchronous>, transform_indices = @transform_4, window_bounds = array<i64: 1, 32>}, {pipeline_mode = #tpu.pipeline_mode<synchronous>, transform_indices = @transform_5, window_bounds = array<i64: 32, 64>}, {pipeline_mode = #tpu.pipeline_mode<synchronous>, transform_indices = @transform_6, window_bounds = array<i64: 32, 64>}, {pipeline_mode = #tpu.pipeline_mode<synchronous>, transform_indices = @transform_7, window_bounds = array<i64: 4, 64>}, {pipeline_mode = #tpu.pipeline_mode<synchronous>, transform_indices = @transform_8, window_bounds = array<i64: 1, 64>}, {pipeline_mode = #tpu.pipeline_mode<synchronous>, transform_indices = @transform_9, window_bounds = array<i64: 64, 2>}, {pipeline_mode = #tpu.pipeline_mode<synchronous>, transform_indices = @transform_10, window_bounds = array<i64: 32, 64>}, {pipeline_mode = #tpu.pipeline_mode<synchronous>, transform_indices = @transform_11, window_bounds = array<i64: 2, 64>}, {pipeline_mode = #tpu.pipeline_mode<synchronous>, transform_indices = @transform_12, window_bounds = array<i64: 1, 64>}, {pipeline_mode = #tpu.pipeline_mode<synchronous>, transform_indices = @transform_13, window_bounds = array<i64: 16, 64>}, {pipeline_mode = #tpu.pipeline_mode<synchronous>, transform_indices = @transform_14, window_bounds = array<i64: 1, 64>}, {pipeline_mode = #tpu.pipeline_mode<synchronous>, transform_indices = @transform_15, window_bounds = array<i64: 64, 32>}, {transform_indices = @transform_16, window_bounds = array<i64: 1, 8, 32>}, {transform_indices = @transform_17, window_bounds = array<i64: 1, 8, 32>}, {transform_indices = @transform_18, window_bounds = array<i64: 1, 16, 64>}]} {
    %c0 = arith.constant 0 : index
    %c0_0 = arith.constant 0 : index
    %c0_1 = arith.constant 0 : index
    %0 = vector.load %arg2[%c0, %c0_0, %c0_1] : memref<1x8x32xf32, #tpu.memory_space<vmem>>, vector<1x8x32xf32>
    %1 = vector.shape_cast %0 : vector<1x8x32xf32> to vector<8x32xf32>
    %c0_2 = arith.constant 0 : index
    %c0_3 = arith.constant 0 : index
    %c0_4 = arith.constant 0 : index
    %2 = vector.load %arg3[%c0_2, %c0_3, %c0_4] : memref<1x8x32xf32, #tpu.memory_space<vmem>>, vector<1x8x32xf32>
    %3 = vector.shape_cast %2 : vector<1x8x32xf32> to vector<8x32xf32>
    %4 = arith.addf %1, %3 : vector<8x32xf32>
    %c0_5 = arith.constant 0 : index
    %c0_6 = arith.constant 0 : index
    %c0_7 = arith.constant 0 : index
    %5 = vector.load %arg19[%c0_5, %c0_6, %c0_7] : memref<1x8x32xf32, #tpu.memory_space<vmem>>, vector<1x8x32xf32>
    %6 = vector.shape_cast %5 : vector<1x8x32xf32> to vector<8x32xf32>
    %7 = vector.shape_cast %4 : vector<8x32xf32> to vector<1x8x32xf32>
    tpu.vector_store %arg19[%c0_5, %c0_6, %c0_7], %7 {strides = array<i32>} : memref<1x8x32xf32, #tpu.memory_space<vmem>>, vector<1x8x32xf32>,
    %cst = arith.constant dense<0.000000e+00> : vector<8xf32>
    %8 = vector.multi_reduction <add>, %4, %cst [1] : vector<8x32xf32> to vector<8xf32>
    %9 = vector.shape_cast %8 : vector<8xf32> to vector<8x1xf32>
    %cst_8 = arith.constant 3.200000e+01 : f32
    %10 = vector.broadcast %cst_8 : f32 to vector<8x1xf32>
    %11 = arith.divf %9, %10 : vector<8x1xf32>
    %12 = vector.broadcast %11 : vector<8x1xf32> to vector<8x32xf32>
    %13 = arith.subf %4, %12 : vector<8x32xf32>
    %14 = arith.mulf %13, %13 : vector<8x32xf32>
    %cst_9 = arith.constant dense<0.000000e+00> : vector<8xf32>
    %15 = vector.multi_reduction <add>, %14, %cst_9 [1] : vector<8x32xf32> to vector<8xf32>
    %16 = vector.shape_cast %15 : vector<8xf32> to vector<8x1xf32>
    %cst_10 = arith.constant 3.200000e+01 : f32
    %17 = vector.broadcast %cst_10 : f32 to vector<8x1xf32>
    %18 = arith.divf %16, %17 : vector<8x1xf32>
    %cst_11 = arith.constant 9.99999974E-6 : f32
    %19 = vector.broadcast %cst_11 : f32 to vector<8x1xf32>
    %20 = arith.addf %18, %19 : vector<8x1xf32>
    %21 = math.rsqrt %20 : vector<8x1xf32>
    %22 = vector.broadcast %21 : vector<8x1xf32> to vector<8x32xf32>
    %23 = arith.mulf %13, %22 : vector<8x32xf32>
    %c0_12 = arith.constant 0 : index
    %c0_13 = arith.constant 0 : index
    %24 = vector.load %arg5[%c0_12, %c0_13] : memref<1x32xf32, #tpu.memory_space<vmem>>, vector<1x32xf32>
    %25 = vector.broadcast %24 : vector<1x32xf32> to vector<8x32xf32>
    %26 = arith.mulf %23, %25 : vector<8x32xf32>
    %c0_14 = arith.constant 0 : index
    %c0_15 = arith.constant 0 : index
    %27 = vector.load %arg6[%c0_14, %c0_15] : memref<1x32xf32, #tpu.memory_space<vmem>>, vector<1x32xf32>
    %28 = vector.broadcast %27 : vector<1x32xf32> to vector<8x32xf32>
    %29 = arith.addf %26, %28 : vector<8x32xf32>
    %30 = arith.truncf %29 : vector<8x32xf32> to vector<8x32xbf16>
    %c0_i32 = arith.constant 0 : i32
    %31 = arith.cmpi eq, %arg1, %c0_i32 : i32
    %32 = arith.extui %31 : i1 to i32
    %c0_i32_16 = arith.constant 0 : i32
    %33 = arith.cmpi ne, %32, %c0_i32_16 : i32
    scf.if %33 {
      %cst_101 = arith.constant 0.000000e+00 : f32
      %264 = vector.broadcast %cst_101 : f32 to vector<3x64xf32>
      %c0_102 = arith.constant 0 : index
      %c0_103 = arith.constant 0 : index
      %265 = vector.load %arg27[%c0_102, %c0_103] : memref<3x64xf32, #tpu.memory_space<vmem>>, vector<3x64xf32>
      tpu.vector_store %arg27[%c0_102, %c0_103], %264 {strides = array<i32>} : memref<3x64xf32, #tpu.memory_space<vmem>>, vector<3x64xf32>,
      %c0_104 = arith.constant 0 : index
      %c0_105 = arith.constant 0 : index
      %c0_106 = arith.constant 0 : index
      %266 = vector.load %arg4[%c0_104, %c0_105, %c0_106] : memref<1x16x64xf32, #tpu.memory_space<vmem>>, vector<1x16x64xf32>
      %267 = vector.shape_cast %266 : vector<1x16x64xf32> to vector<16x64xf32>
      %c0_107 = arith.constant 0 : index
      %c0_108 = arith.constant 0 : index
      %268 = vector.load %arg26[%c0_107, %c0_108] : memref<16x64xf32, #tpu.memory_space<vmem>>, vector<16x64xf32>
      tpu.vector_store %arg26[%c0_107, %c0_108], %267 {strides = array<i32>} : memref<16x64xf32, #tpu.memory_space<vmem>>, vector<16x64xf32>,
    } else {
    }
    %c0_17 = arith.constant 0 : index
    %c0_18 = arith.constant 0 : index
    %34 = vector.load %arg7[%c0_17, %c0_18] : memref<32x64xbf16, #tpu.memory_space<vmem>>, vector<32x64xbf16>
    %cst_19 = arith.constant dense<0.000000e+00> : vector<8x64xf32>
    %35 = tpu.matmul %30, %34, %cst_19 {dimension_numbers = #tpu.dot_dimension_numbers<[1], [0], [0], [1], [0, 0, 1, 1], [], []>} : vector<8x32xbf16>, vector<32x64xbf16>, vector<8x64xf32> -> vector<8x64xf32>
    %c0_20 = arith.constant 0 : index
    %c0_21 = arith.constant 0 : index
    %36 = vector.load %arg8[%c0_20, %c0_21] : memref<32x64xbf16, #tpu.memory_space<vmem>>, vector<32x64xbf16>
    %cst_22 = arith.constant dense<0.000000e+00> : vector<8x64xf32>
    %37 = tpu.matmul %30, %36, %cst_22 {dimension_numbers = #tpu.dot_dimension_numbers<[1], [0], [0], [1], [0, 0, 1, 1], [], []>} : vector<8x32xbf16>, vector<32x64xbf16>, vector<8x64xf32> -> vector<8x64xf32>
    %38 = arith.truncf %37 : vector<8x64xf32> to vector<8x64xbf16>
    %c0_23 = arith.constant 0 : index
    %c0_24 = arith.constant 0 : index
    %39 = vector.load %arg24[%c0_23, %c0_24] : memref<8x64xbf16, #tpu.memory_space<vmem>>, vector<8x64xbf16>
    tpu.vector_store %arg24[%c0_23, %c0_24], %38 {strides = array<i32>} : memref<8x64xbf16, #tpu.memory_space<vmem>>, vector<8x64xbf16>,
    %c0_25 = arith.constant 0 : index
    %c0_26 = arith.constant 0 : index
    %40 = vector.load %arg27[%c0_25, %c0_26] : memref<3x64xf32, #tpu.memory_space<vmem>>, vector<3x64xf32>
    %c5 = arith.constant 5 : index
    %c0_27 = arith.constant 0 : index
    %41 = vector.load %arg21[%c5, %c0_27] : memref<16x64xf32, #tpu.memory_space<vmem>>, vector<3x64xf32>
    tpu.vector_store %arg21[%c5, %c0_27], %40 {strides = array<i32>} : memref<16x64xf32, #tpu.memory_space<vmem>>, vector<3x64xf32>,
    %c8 = arith.constant 8 : index
    %c0_28 = arith.constant 0 : index
    %42 = vector.load %arg21[%c8, %c0_28] : memref<16x64xf32, #tpu.memory_space<vmem>>, vector<8x64xf32>
    tpu.vector_store %arg21[%c8, %c0_28], %35 {strides = array<i32>} : memref<16x64xf32, #tpu.memory_space<vmem>>, vector<8x64xf32>,
    %43 = vector.extract_strided_slice %35 {offsets = [5, 0], sizes = [3, 64], strides = [1, 1]} : vector<8x64xf32> to vector<3x64xf32>
    %c0_29 = arith.constant 0 : index
    %c0_30 = arith.constant 0 : index
    %44 = vector.load %arg27[%c0_29, %c0_30] : memref<3x64xf32, #tpu.memory_space<vmem>>, vector<3x64xf32>
    tpu.vector_store %arg27[%c0_29, %c0_30], %43 {strides = array<i32>} : memref<3x64xf32, #tpu.memory_space<vmem>>, vector<3x64xf32>,
    %c0_31 = arith.constant 0 : index
    %c0_32 = arith.constant 0 : index
    %45 = vector.load %arg10[%c0_31, %c0_32] : memref<1x64xf32, #tpu.memory_space<vmem>>, vector<1x64xf32>
    %46 = vector.shape_cast %45 : vector<1x64xf32> to vector<1x64xf32>
    %47 = vector.broadcast %46 : vector<1x64xf32> to vector<8x64xf32>
    %c3 = arith.constant 3 : index
    %c0_33 = arith.constant 0 : index
    %48 = vector.load %arg9[%c3, %c0_33] : memref<4x64xf32, #tpu.memory_space<vmem>>, vector<1x64xf32>
    %c8_34 = arith.constant 8 : index
    %c0_35 = arith.constant 0 : index
    %49 = vector.load %arg21[%c8_34, %c0_35] : memref<16x64xf32, #tpu.memory_space<vmem>>, vector<8x64xf32>
    %50 = vector.broadcast %48 : vector<1x64xf32> to vector<8x64xf32>
    %51 = arith.mulf %49, %50 : vector<8x64xf32>
    %52 = arith.addf %47, %51 : vector<8x64xf32>
    %c2 = arith.constant 2 : index
    %c0_36 = arith.constant 0 : index
    %53 = vector.load %arg9[%c2, %c0_36] : memref<4x64xf32, #tpu.memory_space<vmem>>, vector<1x64xf32>
    %c7 = arith.constant 7 : index
    %c0_37 = arith.constant 0 : index
    %54 = vector.load %arg21[%c7, %c0_37] : memref<16x64xf32, #tpu.memory_space<vmem>>, vector<8x64xf32>
    %55 = vector.broadcast %53 : vector<1x64xf32> to vector<8x64xf32>
    %56 = arith.mulf %54, %55 : vector<8x64xf32>
    %57 = arith.addf %52, %56 : vector<8x64xf32>
    %c1 = arith.constant 1 : index
    %c0_38 = arith.constant 0 : index
    %58 = vector.load %arg9[%c1, %c0_38] : memref<4x64xf32, #tpu.memory_space<vmem>>, vector<1x64xf32>
    %c6 = arith.constant 6 : index
    %c0_39 = arith.constant 0 : index
    %59 = vector.load %arg21[%c6, %c0_39] : memref<16x64xf32, #tpu.memory_space<vmem>>, vector<8x64xf32>
    %60 = vector.broadcast %58 : vector<1x64xf32> to vector<8x64xf32>
    %61 = arith.mulf %59, %60 : vector<8x64xf32>
    %62 = arith.addf %57, %61 : vector<8x64xf32>
    %c0_40 = arith.constant 0 : index
    %c0_41 = arith.constant 0 : index
    %63 = vector.load %arg9[%c0_40, %c0_41] : memref<4x64xf32, #tpu.memory_space<vmem>>, vector<1x64xf32>
    %c5_42 = arith.constant 5 : index
    %c0_43 = arith.constant 0 : index
    %64 = vector.load %arg21[%c5_42, %c0_43] : memref<16x64xf32, #tpu.memory_space<vmem>>, vector<8x64xf32>
    %65 = vector.broadcast %63 : vector<1x64xf32> to vector<8x64xf32>
    %66 = arith.mulf %64, %65 : vector<8x64xf32>
    %67 = arith.addf %62, %66 : vector<8x64xf32>
    %cst_44 = arith.constant 0.000000e+00 : f32
    %68 = vector.broadcast %cst_44 : f32 to vector<8x64xf32>
    %69 = arith.subf %68, %67 : vector<8x64xf32>
    %70 = math.exp %69 : vector<8x64xf32>
    %cst_45 = arith.constant 1.000000e+00 : f32
    %71 = vector.broadcast %cst_45 : f32 to vector<8x64xf32>
    %72 = arith.addf %71, %70 : vector<8x64xf32>
    %73 = tpu.reciprocal %72 {approx = true} : vector<8x64xf32> -> vector<8x64xf32>
    %74 = arith.mulf %67, %73 : vector<8x64xf32>
    %c0_46 = arith.constant 0 : index
    %c0_47 = arith.constant 0 : index
    %75 = vector.load %arg22[%c0_46, %c0_47] : memref<8x64xf32, #tpu.memory_space<vmem>>, vector<8x64xf32>
    tpu.vector_store %arg22[%c0_46, %c0_47], %74 {strides = array<i32>} : memref<8x64xf32, #tpu.memory_space<vmem>>, vector<8x64xf32>,
    %76 = arith.truncf %74 : vector<8x64xf32> to vector<8x64xbf16>
    %c0_48 = arith.constant 0 : index
    %c0_49 = arith.constant 0 : index
    %77 = vector.load %arg11[%c0_48, %c0_49] : memref<64x2xbf16, #tpu.memory_space<vmem>>, vector<64x2xbf16>
    %cst_50 = arith.constant dense<0.000000e+00> : vector<8x2xf32>
    %78 = tpu.matmul %76, %77, %cst_50 {dimension_numbers = #tpu.dot_dimension_numbers<[1], [0], [0], [1], [0, 0, 1, 1], [], []>} : vector<8x64xbf16>, vector<64x2xbf16>, vector<8x2xf32> -> vector<8x2xf32>
    %c0_51 = arith.constant 0 : index
    %c0_52 = arith.constant 0 : index
    %79 = vector.load %arg13[%c0_51, %c0_52] : memref<2x64xf32, #tpu.memory_space<vmem>>, vector<2x64xf32>
    %cst_53 = arith.constant dense<0.000000e+00> : vector<8x64xf32>
    %80 = tpu.matmul %78, %79, %cst_53 {dimension_numbers = #tpu.dot_dimension_numbers<[1], [0], [0], [1], [0, 0, 1, 1], [], []>} : vector<8x2xf32>, vector<2x64xf32>, vector<8x64xf32> -> vector<8x64xf32>
    %c0_54 = arith.constant 0 : index
    %c0_55 = arith.constant 0 : index
    %81 = vector.load %arg14[%c0_54, %c0_55] : memref<1x64xf32, #tpu.memory_space<vmem>>, vector<1x64xf32>
    %82 = vector.broadcast %81 : vector<1x64xf32> to vector<8x64xf32>
    %83 = arith.addf %80, %82 : vector<8x64xf32>
    %cst_56 = arith.constant 0.000000e+00 : f32
    %84 = vector.broadcast %cst_56 : f32 to vector<8x64xf32>
    %85 = arith.maximumf %83, %84 : vector<8x64xf32>
    %86 = math.absf %83 : vector<8x64xf32>
    %cst_57 = arith.constant 0.000000e+00 : f32
    %87 = vector.broadcast %cst_57 : f32 to vector<8x64xf32>
    %88 = arith.subf %87, %86 : vector<8x64xf32>
    %89 = math.exp %88 : vector<8x64xf32>
    %cst_58 = arith.constant 1.000000e+00 : f32
    %90 = vector.broadcast %cst_58 : f32 to vector<8x64xf32>
    %91 = arith.addf %90, %89 : vector<8x64xf32>
    %92 = math.log %91 : vector<8x64xf32>
    %93 = arith.addf %85, %92 : vector<8x64xf32>
    %c0_59 = arith.constant 0 : index
    %c0_60 = arith.constant 0 : index
    %94 = vector.load %arg23[%c0_59, %c0_60] : memref<8x64xf32, #tpu.memory_space<vmem>>, vector<8x64xf32>
    tpu.vector_store %arg23[%c0_59, %c0_60], %93 {strides = array<i32>} : memref<8x64xf32, #tpu.memory_space<vmem>>, vector<8x64xf32>,
    %c0_61 = arith.constant 0 : index
    %c0_62 = arith.constant 0 : index
    %95 = vector.load %arg15[%c0_61, %c0_62] : memref<16x64xf32, #tpu.memory_space<vmem>>, vector<16x64xf32>
    %c0_63 = arith.constant 0 : index
    %c0_64 = arith.constant 0 : index
    %96 = vector.load %arg16[%c0_63, %c0_64] : memref<1x64xf32, #tpu.memory_space<vmem>>, vector<1x64xf32>
    %c0_65 = arith.constant 0 : index
    %c0_66 = arith.constant 0 : index
    %97 = vector.load %arg12[%c0_65, %c0_66] : memref<32x64xbf16, #tpu.memory_space<vmem>>, vector<32x64xbf16>
    %c0_i32_67 = arith.constant 0 : i32
    %c8_i32 = arith.constant 8 : i32
    %98 = arith.muli %c0_i32_67, %c8_i32 : i32
    %99 = tpu.assume_multiple %98, 8 : i32
    %100 = arith.index_cast %99 : i32 to index
    %c0_68 = arith.constant 0 : index
    %101 = vector.load %arg23[%100, %c0_68] : memref<8x64xf32, #tpu.memory_space<vmem>>, vector<8x64xf32>
    %102 = arith.index_cast %99 : i32 to index
    %c0_69 = arith.constant 0 : index
    %103 = vector.load %arg22[%102, %c0_69] : memref<8x64xf32, #tpu.memory_space<vmem>>, vector<8x64xf32>
    %104 = arith.truncf %103 : vector<8x64xf32> to vector<8x64xbf16>
    %cst_70 = arith.constant dense<0.000000e+00> : vector<32x8xf32>
    %105 = tpu.matmul %97, %104, %cst_70 {dimension_numbers = #tpu.dot_dimension_numbers<[1], [1], [0], [0], [0, 0, 1, 0], [], []>} : vector<32x64xbf16>, vector<8x64xbf16>, vector<32x8xf32> -> vector<32x8xf32>
    %106 = arith.mulf %101, %103 : vector<8x64xf32>
    %107 = vector.extract_strided_slice %101 {offsets = [0, 0], sizes = [1, 64], strides = [1, 1]} : vector<8x64xf32> to vector<1x64xf32>
    %108 = vector.broadcast %107 : vector<1x64xf32> to vector<16x64xf32>
    %109 = arith.mulf %108, %95 : vector<16x64xf32>
    %110 = math.exp %109 : vector<16x64xf32>
    %111 = vector.extract_strided_slice %106 {offsets = [0, 0], sizes = [1, 64], strides = [1, 1]} : vector<8x64xf32> to vector<1x64xf32>
    %112 = vector.extract_strided_slice %105 {offsets = [0, 0], sizes = [16, 1], strides = [1, 1]} : vector<32x8xf32> to vector<16x1xf32>
    %113 = vector.broadcast %111 : vector<1x64xf32> to vector<16x64xf32>
    %114 = vector.broadcast %112 : vector<16x1xf32> to vector<16x64xf32>
    %115 = arith.mulf %113, %114 : vector<16x64xf32>
    %116 = vector.extract_strided_slice %101 {offsets = [1, 0], sizes = [1, 64], strides = [1, 1]} : vector<8x64xf32> to vector<1x64xf32>
    %117 = vector.broadcast %116 : vector<1x64xf32> to vector<16x64xf32>
    %118 = arith.mulf %117, %95 : vector<16x64xf32>
    %119 = math.exp %118 : vector<16x64xf32>
    %120 = vector.extract_strided_slice %106 {offsets = [1, 0], sizes = [1, 64], strides = [1, 1]} : vector<8x64xf32> to vector<1x64xf32>
    %121 = vector.extract_strided_slice %105 {offsets = [0, 1], sizes = [16, 1], strides = [1, 1]} : vector<32x8xf32> to vector<16x1xf32>
    %122 = vector.broadcast %120 : vector<1x64xf32> to vector<16x64xf32>
    %123 = vector.broadcast %121 : vector<16x1xf32> to vector<16x64xf32>
    %124 = arith.mulf %122, %123 : vector<16x64xf32>
    %125 = vector.extract_strided_slice %101 {offsets = [2, 0], sizes = [1, 64], strides = [1, 1]} : vector<8x64xf32> to vector<1x64xf32>
    %126 = vector.broadcast %125 : vector<1x64xf32> to vector<16x64xf32>
    %127 = arith.mulf %126, %95 : vector<16x64xf32>
    %128 = math.exp %127 : vector<16x64xf32>
    %129 = vector.extract_strided_slice %106 {offsets = [2, 0], sizes = [1, 64], strides = [1, 1]} : vector<8x64xf32> to vector<1x64xf32>
    %130 = vector.extract_strided_slice %105 {offsets = [0, 2], sizes = [16, 1], strides = [1, 1]} : vector<32x8xf32> to vector<16x1xf32>
    %131 = vector.broadcast %129 : vector<1x64xf32> to vector<16x64xf32>
    %132 = vector.broadcast %130 : vector<16x1xf32> to vector<16x64xf32>
    %133 = arith.mulf %131, %132 : vector<16x64xf32>
    %134 = vector.extract_strided_slice %101 {offsets = [3, 0], sizes = [1, 64], strides = [1, 1]} : vector<8x64xf32> to vector<1x64xf32>
    %135 = vector.broadcast %134 : vector<1x64xf32> to vector<16x64xf32>
    %136 = arith.mulf %135, %95 : vector<16x64xf32>
    %137 = math.exp %136 : vector<16x64xf32>
    %138 = vector.extract_strided_slice %106 {offsets = [3, 0], sizes = [1, 64], strides = [1, 1]} : vector<8x64xf32> to vector<1x64xf32>
    %139 = vector.extract_strided_slice %105 {offsets = [0, 3], sizes = [16, 1], strides = [1, 1]} : vector<32x8xf32> to vector<16x1xf32>
    %140 = vector.broadcast %138 : vector<1x64xf32> to vector<16x64xf32>
    %141 = vector.broadcast %139 : vector<16x1xf32> to vector<16x64xf32>
    %142 = arith.mulf %140, %141 : vector<16x64xf32>
    %143 = vector.extract_strided_slice %101 {offsets = [4, 0], sizes = [1, 64], strides = [1, 1]} : vector<8x64xf32> to vector<1x64xf32>
    %144 = vector.broadcast %143 : vector<1x64xf32> to vector<16x64xf32>
    %145 = arith.mulf %144, %95 : vector<16x64xf32>
    %146 = math.exp %145 : vector<16x64xf32>
    %147 = vector.extract_strided_slice %106 {offsets = [4, 0], sizes = [1, 64], strides = [1, 1]} : vector<8x64xf32> to vector<1x64xf32>
    %148 = vector.extract_strided_slice %105 {offsets = [0, 4], sizes = [16, 1], strides = [1, 1]} : vector<32x8xf32> to vector<16x1xf32>
    %149 = vector.broadcast %147 : vector<1x64xf32> to vector<16x64xf32>
    %150 = vector.broadcast %148 : vector<16x1xf32> to vector<16x64xf32>
    %151 = arith.mulf %149, %150 : vector<16x64xf32>
    %152 = vector.extract_strided_slice %101 {offsets = [5, 0], sizes = [1, 64], strides = [1, 1]} : vector<8x64xf32> to vector<1x64xf32>
    %153 = vector.broadcast %152 : vector<1x64xf32> to vector<16x64xf32>
    %154 = arith.mulf %153, %95 : vector<16x64xf32>
    %155 = math.exp %154 : vector<16x64xf32>
    %156 = vector.extract_strided_slice %106 {offsets = [5, 0], sizes = [1, 64], strides = [1, 1]} : vector<8x64xf32> to vector<1x64xf32>
    %157 = vector.extract_strided_slice %105 {offsets = [0, 5], sizes = [16, 1], strides = [1, 1]} : vector<32x8xf32> to vector<16x1xf32>
    %158 = vector.broadcast %156 : vector<1x64xf32> to vector<16x64xf32>
    %159 = vector.broadcast %157 : vector<16x1xf32> to vector<16x64xf32>
    %160 = arith.mulf %158, %159 : vector<16x64xf32>
    %161 = vector.extract_strided_slice %101 {offsets = [6, 0], sizes = [1, 64], strides = [1, 1]} : vector<8x64xf32> to vector<1x64xf32>
    %162 = vector.broadcast %161 : vector<1x64xf32> to vector<16x64xf32>
    %163 = arith.mulf %162, %95 : vector<16x64xf32>
    %164 = math.exp %163 : vector<16x64xf32>
    %165 = vector.extract_strided_slice %106 {offsets = [6, 0], sizes = [1, 64], strides = [1, 1]} : vector<8x64xf32> to vector<1x64xf32>
    %166 = vector.extract_strided_slice %105 {offsets = [0, 6], sizes = [16, 1], strides = [1, 1]} : vector<32x8xf32> to vector<16x1xf32>
    %167 = vector.broadcast %165 : vector<1x64xf32> to vector<16x64xf32>
    %168 = vector.broadcast %166 : vector<16x1xf32> to vector<16x64xf32>
    %169 = arith.mulf %167, %168 : vector<16x64xf32>
    %170 = vector.extract_strided_slice %101 {offsets = [7, 0], sizes = [1, 64], strides = [1, 1]} : vector<8x64xf32> to vector<1x64xf32>
    %171 = vector.broadcast %170 : vector<1x64xf32> to vector<16x64xf32>
    %172 = arith.mulf %171, %95 : vector<16x64xf32>
    %173 = math.exp %172 : vector<16x64xf32>
    %174 = vector.extract_strided_slice %106 {offsets = [7, 0], sizes = [1, 64], strides = [1, 1]} : vector<8x64xf32> to vector<1x64xf32>
    %175 = vector.extract_strided_slice %105 {offsets = [0, 7], sizes = [16, 1], strides = [1, 1]} : vector<32x8xf32> to vector<16x1xf32>
    %176 = vector.broadcast %174 : vector<1x64xf32> to vector<16x64xf32>
    %177 = vector.broadcast %175 : vector<16x1xf32> to vector<16x64xf32>
    %178 = arith.mulf %176, %177 : vector<16x64xf32>
    %c0_71 = arith.constant 0 : index
    %c0_72 = arith.constant 0 : index
    %179 = vector.load %arg26[%c0_71, %c0_72] : memref<16x64xf32, #tpu.memory_space<vmem>>, vector<16x64xf32>
    %180 = arith.mulf %110, %179 : vector<16x64xf32>
    %181 = arith.addf %180, %115 : vector<16x64xf32>
    %182 = arith.mulf %119, %181 : vector<16x64xf32>
    %183 = arith.addf %182, %124 : vector<16x64xf32>
    %184 = arith.mulf %128, %183 : vector<16x64xf32>
    %185 = arith.addf %184, %133 : vector<16x64xf32>
    %186 = arith.mulf %137, %185 : vector<16x64xf32>
    %187 = arith.addf %186, %142 : vector<16x64xf32>
    %188 = arith.mulf %146, %187 : vector<16x64xf32>
    %189 = arith.addf %188, %151 : vector<16x64xf32>
    %190 = arith.mulf %155, %189 : vector<16x64xf32>
    %191 = arith.addf %190, %160 : vector<16x64xf32>
    %192 = arith.mulf %164, %191 : vector<16x64xf32>
    %193 = arith.addf %192, %169 : vector<16x64xf32>
    %194 = arith.mulf %173, %193 : vector<16x64xf32>
    %195 = arith.addf %194, %178 : vector<16x64xf32>
    %c0_73 = arith.constant 0 : index
    %c0_74 = arith.constant 0 : index
    %196 = vector.load %arg26[%c0_73, %c0_74] : memref<16x64xf32, #tpu.memory_space<vmem>>, vector<16x64xf32>
    tpu.vector_store %arg26[%c0_73, %c0_74], %195 {strides = array<i32>} : memref<16x64xf32, #tpu.memory_space<vmem>>, vector<16x64xf32>,
    %197 = vector.extract_strided_slice %105 {offsets = [16, 0], sizes = [16, 1], strides = [1, 1]} : vector<32x8xf32> to vector<16x1xf32>
    %198 = vector.broadcast %197 : vector<16x1xf32> to vector<16x64xf32>
    %199 = arith.mulf %181, %198 : vector<16x64xf32>
    %cst_75 = arith.constant dense<0.000000e+00> : vector<64xf32>
    %200 = vector.multi_reduction <add>, %199, %cst_75 [0] : vector<16x64xf32> to vector<64xf32>
    %201 = vector.shape_cast %200 : vector<64xf32> to vector<1x64xf32>
    %202 = vector.extract_strided_slice %105 {offsets = [16, 1], sizes = [16, 1], strides = [1, 1]} : vector<32x8xf32> to vector<16x1xf32>
    %203 = vector.broadcast %202 : vector<16x1xf32> to vector<16x64xf32>
    %204 = arith.mulf %183, %203 : vector<16x64xf32>
    %cst_76 = arith.constant dense<0.000000e+00> : vector<64xf32>
    %205 = vector.multi_reduction <add>, %204, %cst_76 [0] : vector<16x64xf32> to vector<64xf32>
    %206 = vector.shape_cast %205 : vector<64xf32> to vector<1x64xf32>
    %207 = vector.extract_strided_slice %105 {offsets = [16, 2], sizes = [16, 1], strides = [1, 1]} : vector<32x8xf32> to vector<16x1xf32>
    %208 = vector.broadcast %207 : vector<16x1xf32> to vector<16x64xf32>
    %209 = arith.mulf %185, %208 : vector<16x64xf32>
    %cst_77 = arith.constant dense<0.000000e+00> : vector<64xf32>
    %210 = vector.multi_reduction <add>, %209, %cst_77 [0] : vector<16x64xf32> to vector<64xf32>
    %211 = vector.shape_cast %210 : vector<64xf32> to vector<1x64xf32>
    %212 = vector.extract_strided_slice %105 {offsets = [16, 3], sizes = [16, 1], strides = [1, 1]} : vector<32x8xf32> to vector<16x1xf32>
    %213 = vector.broadcast %212 : vector<16x1xf32> to vector<16x64xf32>
    %214 = arith.mulf %187, %213 : vector<16x64xf32>
    %cst_78 = arith.constant dense<0.000000e+00> : vector<64xf32>
    %215 = vector.multi_reduction <add>, %214, %cst_78 [0] : vector<16x64xf32> to vector<64xf32>
    %216 = vector.shape_cast %215 : vector<64xf32> to vector<1x64xf32>
    %217 = vector.extract_strided_slice %105 {offsets = [16, 4], sizes = [16, 1], strides = [1, 1]} : vector<32x8xf32> to vector<16x1xf32>
    %218 = vector.broadcast %217 : vector<16x1xf32> to vector<16x64xf32>
    %219 = arith.mulf %189, %218 : vector<16x64xf32>
    %cst_79 = arith.constant dense<0.000000e+00> : vector<64xf32>
    %220 = vector.multi_reduction <add>, %219, %cst_79 [0] : vector<16x64xf32> to vector<64xf32>
    %221 = vector.shape_cast %220 : vector<64xf32> to vector<1x64xf32>
    %222 = vector.extract_strided_slice %105 {offsets = [16, 5], sizes = [16, 1], strides = [1, 1]} : vector<32x8xf32> to vector<16x1xf32>
    %223 = vector.broadcast %222 : vector<16x1xf32> to vector<16x64xf32>
    %224 = arith.mulf %191, %223 : vector<16x64xf32>
    %cst_80 = arith.constant dense<0.000000e+00> : vector<64xf32>
    %225 = vector.multi_reduction <add>, %224, %cst_80 [0] : vector<16x64xf32> to vector<64xf32>
    %226 = vector.shape_cast %225 : vector<64xf32> to vector<1x64xf32>
    %227 = vector.extract_strided_slice %105 {offsets = [16, 6], sizes = [16, 1], strides = [1, 1]} : vector<32x8xf32> to vector<16x1xf32>
    %228 = vector.broadcast %227 : vector<16x1xf32> to vector<16x64xf32>
    %229 = arith.mulf %193, %228 : vector<16x64xf32>
    %cst_81 = arith.constant dense<0.000000e+00> : vector<64xf32>
    %230 = vector.multi_reduction <add>, %229, %cst_81 [0] : vector<16x64xf32> to vector<64xf32>
    %231 = vector.shape_cast %230 : vector<64xf32> to vector<1x64xf32>
    %232 = vector.extract_strided_slice %105 {offsets = [16, 7], sizes = [16, 1], strides = [1, 1]} : vector<32x8xf32> to vector<16x1xf32>
    %233 = vector.broadcast %232 : vector<16x1xf32> to vector<16x64xf32>
    %234 = arith.mulf %195, %233 : vector<16x64xf32>
    %cst_82 = arith.constant dense<0.000000e+00> : vector<64xf32>
    %235 = vector.multi_reduction <add>, %234, %cst_82 [0] : vector<16x64xf32> to vector<64xf32>
    %236 = vector.shape_cast %235 : vector<64xf32> to vector<1x64xf32>
    %237 = tpu.concatenate %201, %206, %211, %216, %221, %226, %231, %236 in 0 : vector<1x64xf32>, vector<1x64xf32>, vector<1x64xf32>, vector<1x64xf32>, vector<1x64xf32>, vector<1x64xf32>, vector<1x64xf32>, vector<1x64xf32> -> vector<8x64xf32>
    %238 = vector.broadcast %96 : vector<1x64xf32> to vector<8x64xf32>
    %239 = arith.mulf %238, %103 : vector<8x64xf32>
    %240 = arith.addf %237, %239 : vector<8x64xf32>
    %241 = arith.index_cast %99 : i32 to index
    %c0_83 = arith.constant 0 : index
    %242 = vector.load %arg25[%241, %c0_83] : memref<8x64xf32, #tpu.memory_space<vmem>>, vector<8x64xf32>
    tpu.vector_store %arg25[%241, %c0_83], %240 {strides = array<i32>} : memref<8x64xf32, #tpu.memory_space<vmem>>, vector<8x64xf32>,
    %c1_i32 = arith.constant 1 : i32
    %c0_84 = arith.constant 0 : index
    %c0_85 = arith.constant 0 : index
    %243 = vector.load %arg26[%c0_84, %c0_85] : memref<16x64xf32, #tpu.memory_space<vmem>>, vector<16x64xf32>
    %c0_86 = arith.constant 0 : index
    %c0_87 = arith.constant 0 : index
    %c0_88 = arith.constant 0 : index
    %244 = vector.load %arg20[%c0_86, %c0_87, %c0_88] : memref<1x16x64xf32, #tpu.memory_space<vmem>>, vector<1x16x64xf32>
    %245 = vector.shape_cast %244 : vector<1x16x64xf32> to vector<16x64xf32>
    %246 = vector.shape_cast %243 : vector<16x64xf32> to vector<1x16x64xf32>
    tpu.vector_store %arg20[%c0_86, %c0_87, %c0_88], %246 {strides = array<i32>} : memref<1x16x64xf32, #tpu.memory_space<vmem>>, vector<1x16x64xf32>,
    %c0_89 = arith.constant 0 : index
    %c0_90 = arith.constant 0 : index
    %247 = vector.load %arg25[%c0_89, %c0_90] : memref<8x64xf32, #tpu.memory_space<vmem>>, vector<8x64xf32>
    %c0_91 = arith.constant 0 : index
    %c0_92 = arith.constant 0 : index
    %248 = vector.load %arg24[%c0_91, %c0_92] : memref<8x64xbf16, #tpu.memory_space<vmem>>, vector<8x64xbf16>
    %249 = arith.extf %248 : vector<8x64xbf16> to vector<8x64xf32>
    %cst_93 = arith.constant 0.000000e+00 : f32
    %250 = vector.broadcast %cst_93 : f32 to vector<8x64xf32>
    %251 = arith.subf %250, %249 : vector<8x64xf32>
    %252 = math.exp %251 : vector<8x64xf32>
    %cst_94 = arith.constant 1.000000e+00 : f32
    %253 = vector.broadcast %cst_94 : f32 to vector<8x64xf32>
    %254 = arith.addf %253, %252 : vector<8x64xf32>
    %255 = tpu.reciprocal %254 {approx = true} : vector<8x64xf32> -> vector<8x64xf32>
    %256 = arith.mulf %249, %255 : vector<8x64xf32>
    %257 = arith.mulf %247, %256 : vector<8x64xf32>
    %258 = arith.truncf %257 : vector<8x64xf32> to vector<8x64xbf16>
    %c0_95 = arith.constant 0 : index
    %c0_96 = arith.constant 0 : index
    %259 = vector.load %arg17[%c0_95, %c0_96] : memref<64x32xbf16, #tpu.memory_space<vmem>>, vector<64x32xbf16>
    %cst_97 = arith.constant dense<0.000000e+00> : vector<8x32xf32>
    %260 = tpu.matmul %258, %259, %cst_97 {dimension_numbers = #tpu.dot_dimension_numbers<[1], [0], [0], [1], [0, 0, 1, 1], [], []>} : vector<8x64xbf16>, vector<64x32xbf16>, vector<8x32xf32> -> vector<8x32xf32>
    %c0_98 = arith.constant 0 : index
    %c0_99 = arith.constant 0 : index
    %c0_100 = arith.constant 0 : index
    %261 = vector.load %arg18[%c0_98, %c0_99, %c0_100] : memref<1x8x32xf32, #tpu.memory_space<vmem>>, vector<1x8x32xf32>
    %262 = vector.shape_cast %261 : vector<1x8x32xf32> to vector<8x32xf32>
    %263 = vector.shape_cast %260 : vector<8x32xf32> to vector<1x8x32xf32>
    tpu.vector_store %arg18[%c0_98, %c0_99, %c0_100], %263 {strides = array<i32>} : memref<1x8x32xf32, #tpu.memory_space<vmem>>, vector<1x8x32xf32>,
    return
  }
  func.func @transform_0(%arg0: i32, %arg1: i32) -> (i32, i32, i32) {
    %c0_i32 = arith.constant 0 : i32
    %c0_i32_0 = arith.constant 0 : i32
    return %arg0, %arg1, %c0_i32 : i32, i32, i32
  }
  func.func @transform_1(%arg0: i32, %arg1: i32) -> (i32, i32, i32) {
    %c0_i32 = arith.constant 0 : i32
    %c0_i32_0 = arith.constant 0 : i32
    return %arg0, %arg1, %c0_i32 : i32, i32, i32
  }
  func.func @transform_2(%arg0: i32, %arg1: i32) -> (i32, i32, i32) {
    %c0_i32 = arith.constant 0 : i32
    %c0_i32_0 = arith.constant 0 : i32
    %c0_i32_1 = arith.constant 0 : i32
    return %arg0, %c0_i32, %c0_i32_0 : i32, i32, i32
  }
  func.func @transform_3(%arg0: i32, %arg1: i32) -> (i32, i32) {
    %c0_i32 = arith.constant 0 : i32
    %c0_i32_0 = arith.constant 0 : i32
    %c0_i32_1 = arith.constant 0 : i32
    return %c0_i32, %c0_i32_0 : i32, i32
  }
  func.func @transform_4(%arg0: i32, %arg1: i32) -> (i32, i32) {
    %c0_i32 = arith.constant 0 : i32
    %c0_i32_0 = arith.constant 0 : i32
    %c0_i32_1 = arith.constant 0 : i32
    return %c0_i32, %c0_i32_0 : i32, i32
  }
  func.func @transform_5(%arg0: i32, %arg1: i32) -> (i32, i32) {
    %c0_i32 = arith.constant 0 : i32
    %c0_i32_0 = arith.constant 0 : i32
    %c0_i32_1 = arith.constant 0 : i32
    return %c0_i32, %c0_i32_0 : i32, i32
  }
  func.func @transform_6(%arg0: i32, %arg1: i32) -> (i32, i32) {
    %c0_i32 = arith.constant 0 : i32
    %c0_i32_0 = arith.constant 0 : i32
    %c0_i32_1 = arith.constant 0 : i32
    return %c0_i32, %c0_i32_0 : i32, i32
  }
  func.func @transform_7(%arg0: i32, %arg1: i32) -> (i32, i32) {
    %c0_i32 = arith.constant 0 : i32
    %c0_i32_0 = arith.constant 0 : i32
    %c0_i32_1 = arith.constant 0 : i32
    return %c0_i32, %c0_i32_0 : i32, i32
  }
  func.func @transform_8(%arg0: i32, %arg1: i32) -> (i32, i32) {
    %c0_i32 = arith.constant 0 : i32
    %c0_i32_0 = arith.constant 0 : i32
    %c0_i32_1 = arith.constant 0 : i32
    return %c0_i32, %c0_i32_0 : i32, i32
  }
  func.func @transform_9(%arg0: i32, %arg1: i32) -> (i32, i32) {
    %c0_i32 = arith.constant 0 : i32
    %c0_i32_0 = arith.constant 0 : i32
    %c0_i32_1 = arith.constant 0 : i32
    return %c0_i32, %c0_i32_0 : i32, i32
  }
  func.func @transform_10(%arg0: i32, %arg1: i32) -> (i32, i32) {
    %c0_i32 = arith.constant 0 : i32
    %c0_i32_0 = arith.constant 0 : i32
    %c0_i32_1 = arith.constant 0 : i32
    return %c0_i32, %c0_i32_0 : i32, i32
  }
  func.func @transform_11(%arg0: i32, %arg1: i32) -> (i32, i32) {
    %c0_i32 = arith.constant 0 : i32
    %c0_i32_0 = arith.constant 0 : i32
    %c0_i32_1 = arith.constant 0 : i32
    return %c0_i32, %c0_i32_0 : i32, i32
  }
  func.func @transform_12(%arg0: i32, %arg1: i32) -> (i32, i32) {
    %c0_i32 = arith.constant 0 : i32
    %c0_i32_0 = arith.constant 0 : i32
    %c0_i32_1 = arith.constant 0 : i32
    return %c0_i32, %c0_i32_0 : i32, i32
  }
  func.func @transform_13(%arg0: i32, %arg1: i32) -> (i32, i32) {
    %c0_i32 = arith.constant 0 : i32
    %c0_i32_0 = arith.constant 0 : i32
    %c0_i32_1 = arith.constant 0 : i32
    return %c0_i32, %c0_i32_0 : i32, i32
  }
  func.func @transform_14(%arg0: i32, %arg1: i32) -> (i32, i32) {
    %c0_i32 = arith.constant 0 : i32
    %c0_i32_0 = arith.constant 0 : i32
    %c0_i32_1 = arith.constant 0 : i32
    return %c0_i32, %c0_i32_0 : i32, i32
  }
  func.func @transform_15(%arg0: i32, %arg1: i32) -> (i32, i32) {
    %c0_i32 = arith.constant 0 : i32
    %c0_i32_0 = arith.constant 0 : i32
    %c0_i32_1 = arith.constant 0 : i32
    return %c0_i32, %c0_i32_0 : i32, i32
  }
  func.func @transform_16(%arg0: i32, %arg1: i32) -> (i32, i32, i32) {
    %c0_i32 = arith.constant 0 : i32
    %c0_i32_0 = arith.constant 0 : i32
    return %arg0, %arg1, %c0_i32 : i32, i32, i32
  }
  func.func @transform_17(%arg0: i32, %arg1: i32) -> (i32, i32, i32) {
    %c0_i32 = arith.constant 0 : i32
    %c0_i32_0 = arith.constant 0 : i32
    return %arg0, %arg1, %c0_i32 : i32, i32, i32
  }
  func.func @transform_18(%arg0: i32, %arg1: i32) -> (i32, i32, i32) {
    %c0_i32 = arith.constant 0 : i32
    %c0_i32_0 = arith.constant 0 : i32
    %c0_i32_1 = arith.constant 0 : i32
    return %arg0, %c0_i32, %c0_i32_0 : i32, i32, i32
  }
}

</mosaic_0001>

<llo_original>
// kernel: tpu_custom_call.1
$region0: #{tpu_custom_call.1}
  #allocation0 [shape = 'u32[]', space=smem, size = 0x4, offset = 0x4, fixed_abs, tag = 'smem constant byte address 0x4 - core index']
  #allocation1 [shape = 'u32[144,128]{1,0:T(1,128)}', space=vmem, size = 0x12000, scoped, tag = 'internal scratch']
  #allocation2 [shape = 'f32[16,64]{1,0:T(8,128)}', space=vmem, size = 0x2000, scoped, tag = 'scratch operand']
  #allocation3 [shape = 'f32[8,64]{1,0:T(8,128)}', space=vmem, size = 0x1000, scoped, tag = 'scratch operand']
  #allocation4 [shape = 'f32[8,64]{1,0:T(8,128)}', space=vmem, size = 0x1000, scoped, tag = 'scratch operand']
  #allocation5 [shape = 'bf16[8,64]{1,0:T(8,128)(2,1)}', space=vmem, size = 0x800, scoped, tag = 'scratch operand']
  #allocation6 [shape = 'f32[8,64]{1,0:T(8,128)}', space=vmem, size = 0x1000, scoped, tag = 'scratch operand']
  #allocation7 [shape = 'f32[16,64]{1,0:T(8,128)}', space=vmem, size = 0x2000, scoped, tag = 'scratch operand']
  #allocation8 [shape = 'f32[3,64]{1,0:T(4,128)}', space=vmem, size = 0x800, scoped, tag = 'scratch operand']
  %s0 = inlined_call_operand.vmem [shape: f32[2,8,32], index: 0, kind: input, shape index: {}]
  %s1 = inlined_call_operand.vmem [shape: f32[2,8,32], index: 1, kind: input, shape index: {}]
  %s2 = inlined_call_operand.vmem [shape: f32[2,16,64], index: 2, kind: input, shape index: {}]
  %s3 = inlined_call_operand.vmem [shape: f32[1,32], index: 3, kind: input, shape index: {}]
  %s4 = inlined_call_operand.hbm [shape: f32[1,32], index: 4, kind: input, shape index: {}]
  %s5 = inlined_call_operand.vmem [shape: bf16[32,64], index: 5, kind: input, shape index: {}]
  %s6 = inlined_call_operand.hbm [shape: bf16[32,64], index: 6, kind: input, shape index: {}]
  %s7 = inlined_call_operand.hbm [shape: f32[4,64], index: 7, kind: input, shape index: {}]
  %s8 = inlined_call_operand.hbm [shape: f32[1,64], index: 8, kind: input, shape index: {}]
  %s9 = inlined_call_operand.vmem [shape: bf16[64,2], index: 9, kind: input, shape index: {}]
  %s10 = inlined_call_operand.vmem [shape: bf16[32,64], index: 10, kind: input, shape index: {}]
  %s11 = inlined_call_operand.vmem [shape: f32[2,64], index: 11, kind: input, shape index: {}]
  %s12 = inlined_call_operand.vmem [shape: f32[1,64], index: 12, kind: input, shape index: {}]
  %s13 = inlined_call_operand.hbm [shape: f32[16,64], index: 13, kind: input, shape index: {}]
  %s14 = inlined_call_operand.vmem [shape: f32[1,64], index: 14, kind: input, shape index: {}]
  %s15 = inlined_call_operand.vmem [shape: bf16[64,32], index: 15, kind: input, shape index: {}]
  %s16 = inlined_call_operand.hbm [shape: f32[2,8,32], index: 16, kind: output, shape index: {0}]
  %s17 = inlined_call_operand.hbm [shape: f32[2,8,32], index: 17, kind: output, shape index: {1}]
  %s18 = inlined_call_operand.hbm [shape: f32[2,16,64], index: 18, kind: output, shape index: {2}]
  %19 = xla_tuple %s16, %s17, %s18
  %s20 = sld [smem:[#allocation0]]
  $region137: #{tpu_custom_call.1} parent=0
    _
  %s22 = ssub.s32 1, %s20
  %s23 = scalar_select 0, %s22, %s20
  $region1: #{tpu_custom_call.1} parent=0
    #allocation9 [shape = 'u8[512]{0}', space=vmem, size = 0x400, scoped, tag = 'input window, operand 4, single buffered']
    #allocation10 [shape = 's32[2]{0}', space=sflag, size = 0x8, scoped, tag = 'scoped memory for tpu_custom_call.1']
    #allocation11 [shape = 's32[2]{0}', space=sflag, size = 0x8, scoped, tag = 'scoped memory for tpu_custom_call.1']
    #allocation12 [shape = 'u8[8192]{0}', space=vmem, size = 0x2000, scoped, tag = 'input window, operand 6, single buffered']
    #allocation13 [shape = 's32[1]{0}', space=sflag, size = 0x4, scoped, tag = 'scoped memory for tpu_custom_call.1']
    #allocation14 [shape = 'u8[2048]{0}', space=vmem, size = 0x800, scoped, tag = 'input window, operand 7, single buffered']
    #allocation15 [shape = 'u8[512]{0}', space=vmem, size = 0x400, scoped, tag = 'input window, operand 8, single buffered']
    #allocation16 [shape = 's32[1]{0}', space=sflag, size = 0x4, scoped, tag = 'scoped memory for tpu_custom_call.1']
    #allocation17 [shape = 'u8[8192]{0}', space=vmem, size = 0x2000, scoped, tag = 'input window, operand 13, single buffered']
    #allocation18 [shape = 'u8[8192]{0}', space=vmem, size = 0x2000, scoped, tag = 'output window, operand 0']
    #allocation19 [shape = 'u8[8192]{0}', space=vmem, size = 0x2000, scoped, tag = 'output window, operand 1']
    #allocation20 [shape = 's32[2]{0}', space=sflag, size = 0x8, scoped, tag = 'scoped memory for tpu_custom_call.1']
    #allocation21 [shape = 'u8[16384]{0}', space=vmem, size = 0x4000, scoped, tag = 'output window, operand 2']
    %24 = vsyncpa [#allocation10], 0
    %25 = vsyncpa [#allocation13], 0
    %26 = vsyncpa [#allocation16], 0
    %27 = vsyncpa [#allocation11], 0
    %s28 = scalar_lea.sflag [#allocation11], 1
    %29 = vsyncpa %s28, 0
    %30 = vsyncpa [#allocation20], 0
    %s31 = scalar_lea.sflag [#allocation20], 1
    %32 = vsyncpa %s31, 0
    loop: start=0, step=1, limit=4
    $region2: #{tpu_custom_call.1} parent=1 // loop_pre_header
      _
    $region3: #{tpu_custom_call.1} parent=1 // loop_header
      %s34 = sphi 0, %s38
      %p35 = scmp.ge.s32.totalorder %s34, 4
      %s41 = sphi 0, %s53
      %s42 = sphi 0, %s49
      %s43 = sphi 0, %s41
      %s44 = sphi 0, %s42
      %s45 = sphi 0, %s43
      %s46 = sphi 0, %s44
      %s58 = sphi 0, %s60
      %s61 = sphi 0, %s58
      %s62 = sphi 0, %s61
      %s78 = sphi 0, %s62
      %s86 = sphi 0, %s88
      %s89 = sphi 0, %s86
      %s90 = sphi 0, %s89
      %s106 = sphi 0, %s90
      %s112 = sphi 0, %s114
      %s115 = sphi 0, %s112
      %s116 = sphi 0, %s115
      %s132 = sphi 0, %s116
      %s136 = sphi 0, %s136
      %s138 = sphi 0, %s136
      %s139 = sphi 0, %s138
      %s153 = sphi 0, %s139
      %s157 = sphi 0, %s157
      %s159 = sphi 0, %s157
      %s160 = sphi 0, %s159
      %s174 = sphi 0, %s160
      %s178 = sphi 0, %s178
      %s180 = sphi 0, %s178
      %s181 = sphi 0, %s180
      %s195 = sphi 0, %s181
      %s199 = sphi 0, %s199
      %s201 = sphi 0, %s199
      %s202 = sphi 0, %s201
      %s216 = sphi 0, %s202
      %s220 = sphi 0, %s220
      %s222 = sphi 0, %s220
      %s223 = sphi 0, %s222
      %s237 = sphi 0, %s223
      %s241 = sphi 0, %s241
      %s243 = sphi 0, %s241
      %s244 = sphi 0, %s243
      %s258 = sphi 0, %s244
      %s262 = sphi 0, %s262
      %s264 = sphi 0, %s262
      %s265 = sphi 0, %s264
      %s279 = sphi 0, %s265
      %s283 = sphi 0, %s283
      %s285 = sphi 0, %s283
      %s286 = sphi 0, %s285
      %s300 = sphi 0, %s286
      %s304 = sphi 0, %s304
      %s306 = sphi 0, %s304
      %s307 = sphi 0, %s306
      %s321 = sphi 0, %s307
      %s325 = sphi 0, %s325
      %s327 = sphi 0, %s325
      %s328 = sphi 0, %s327
      %s342 = sphi 0, %s328
      %s346 = sphi 0, %s346
      %s348 = sphi 0, %s346
      %s349 = sphi 0, %s348
      %s363 = sphi 0, %s349
      %s367 = sphi 0, %s367
      %s369 = sphi 0, %s367
      %s370 = sphi 0, %s369
      %s384 = sphi 0, %s370
      %s388 = sphi 0, %s388
      %s390 = sphi 0, %s388
      %s391 = sphi 0, %s390
      %s405 = sphi 0, %s391
      %s413 = sphi 0, %s415
      %s416 = sphi 0, %s413
      %s417 = sphi 0, %s416
      %s433 = sphi 0, %s417
      %s441 = sphi 0, %s443
      %s444 = sphi 0, %s441
      %s445 = sphi 0, %s444
      %s461 = sphi 0, %s445
      %s467 = sphi 0, %s469
      %s470 = sphi 0, %s467
      %s471 = sphi 0, %s470
      %s487 = sphi 0, %s471
    $region4: #{tpu_custom_call.1} parent=1 // loop_header_branch
      %37 = sbr.rel (%p35) target = $region8
    $region5: #{tpu_custom_call.1} parent=1 // loop_body
      %s39 = ssub.s32 %s34, 1
      %s40 = ssub.s32 %s34, 2
      %s47 = sadd.s32 1, %s42
      %p48 = scmp.ge.s32.totalorder %s47, 1
      %s49 = scalar_select %p48, 0, %s47
      %s50 = sadd.s32 1, %s41
      %s51 = scalar_select %p48, %s50, %s41
      %p52 = scmp.ge.s32.totalorder %s51, 2
      %s53 = scalar_select %p52, 0, %s51
      %s54 = ssub.s32 %s41, %s53
      %s55 = ssub.s32 %s42, %s49
      %s56 = sor.u32 %s54, %s55
      %p57 = scmp.eq.s32.totalorder %s56, 0
      %s59 = sadd.s32 %s58, 1
      %s60 = scalar_select %p57, %s58, %s59
      %p63 = pneg %p57
      %p64 = scmp.eq.s32.totalorder %s34, 1
      %p65 = por %p63, %p64
      %p66 = scmp.ne.s32.totalorder %s58, %s61
      %p67 = scmp.eq.s32.totalorder %s34, 0
      %p68 = por %p66, %p67
      %p69 = scmp.ne.s32.totalorder %s58, %s61
      %p70 = scmp.eq.s32.totalorder %s39, 1
      %p71 = por %p69, %p70
      %p72 = scmp.ne.s32.totalorder %s61, %s62
      %p73 = scmp.eq.s32.totalorder %s39, 0
      %p74 = por %p72, %p73
      %p75 = scmp.ne.s32.totalorder %s61, %s62
      %p76 = scmp.eq.s32.totalorder %s40, 1
      %p77 = por %p75, %p76
      %p79 = scmp.ne.s32.totalorder %s62, %s78
      %p80 = scmp.eq.s32.totalorder %s40, 0
      %p81 = por %p79, %p80
      %s82 = ssub.s32 %s41, %s53
      %s83 = ssub.s32 %s42, %s49
      %s84 = sor.u32 %s82, %s83
      %p85 = scmp.eq.s32.totalorder %s84, 0
      %s87 = sadd.s32 %s86, 1
      %s88 = scalar_select %p85, %s86, %s87
      %p91 = pneg %p85
      %p92 = scmp.eq.s32.totalorder %s34, 1
      %p93 = por %p91, %p92
      %p94 = scmp.ne.s32.totalorder %s86, %s89
      %p95 = scmp.eq.s32.totalorder %s34, 0
      %p96 = por %p94, %p95
      %p97 = scmp.ne.s32.totalorder %s86, %s89
      %p98 = scmp.eq.s32.totalorder %s39, 1
      %p99 = por %p97, %p98
      %p100 = scmp.ne.s32.totalorder %s89, %s90
      %p101 = scmp.eq.s32.totalorder %s39, 0
      %p102 = por %p100, %p101
      %p103 = scmp.ne.s32.totalorder %s89, %s90
      %p104 = scmp.eq.s32.totalorder %s40, 1
      %p105 = por %p103, %p104
      %p107 = scmp.ne.s32.totalorder %s90, %s106
      %p108 = scmp.eq.s32.totalorder %s40, 0
      %p109 = por %p107, %p108
      %s110 = ssub.s32 %s41, %s53
      %p111 = scmp.eq.s32.totalorder %s110, 0
      %s113 = sadd.s32 %s112, 1
      %s114 = scalar_select %p111, %s112, %s113
      %p117 = pneg %p111
      %p118 = scmp.eq.s32.totalorder %s34, 1
      %p119 = por %p117, %p118
      %p120 = scmp.ne.s32.totalorder %s112, %s115
      %p121 = scmp.eq.s32.totalorder %s34, 0
      %p122 = por %p120, %p121
      %p123 = scmp.ne.s32.totalorder %s112, %s115
      %p124 = scmp.eq.s32.totalorder %s39, 1
      %p125 = por %p123, %p124
      %p126 = scmp.ne.s32.totalorder %s115, %s116
      %p127 = scmp.eq.s32.totalorder %s39, 0
      %p128 = por %p126, %p127
      %p129 = scmp.ne.s32.totalorder %s115, %s116
      %p130 = scmp.eq.s32.totalorder %s40, 1
      %p131 = por %p129, %p130
      %p133 = scmp.ne.s32.totalorder %s116, %s132
      %p134 = scmp.eq.s32.totalorder %s40, 0
      %p135 = por %p133, %p134
      %s137 = sadd.s32 %s136, 1
      %p140 = scmp.eq.s32.totalorder %s34, 1
      %p141 = scmp.ne.s32.totalorder %s136, %s138
      %p142 = scmp.eq.s32.totalorder %s34, 0
      %p143 = por %p141, %p142
      %p144 = scmp.ne.s32.totalorder %s136, %s138
      %p145 = scmp.eq.s32.totalorder %s39, 1
      %p146 = por %p144, %p145
      %p147 = scmp.ne.s32.totalorder %s138, %s139
      %p148 = scmp.eq.s32.totalorder %s39, 0
      %p149 = por %p147, %p148
      %p150 = scmp.ne.s32.totalorder %s138, %s139
      %p151 = scmp.eq.s32.totalorder %s40, 1
      %p152 = por %p150, %p151
      %p154 = scmp.ne.s32.totalorder %s139, %s153
      %p155 = scmp.eq.s32.totalorder %s40, 0
      %p156 = por %p154, %p155
      %s158 = sadd.s32 %s157, 1
      %p161 = scmp.eq.s32.totalorder %s34, 1
      %p162 = scmp.ne.s32.totalorder %s157, %s159
      %p163 = scmp.eq.s32.totalorder %s34, 0
      %p164 = por %p162, %p163
      %p165 = scmp.ne.s32.totalorder %s157, %s159
      %p166 = scmp.eq.s32.totalorder %s39, 1
      %p167 = por %p165, %p166
      %p168 = scmp.ne.s32.totalorder %s159, %s160
      %p169 = scmp.eq.s32.totalorder %s39, 0
      %p170 = por %p168, %p169
      %p171 = scmp.ne.s32.totalorder %s159, %s160
      %p172 = scmp.eq.s32.totalorder %s40, 1
      %p173 = por %p171, %p172
      %p175 = scmp.ne.s32.totalorder %s160, %s174
      %p176 = scmp.eq.s32.totalorder %s40, 0
      %p177 = por %p175, %p176
      %s179 = sadd.s32 %s178, 1
      %p182 = scmp.eq.s32.totalorder %s34, 1
      %p183 = scmp.ne.s32.totalorder %s178, %s180
      %p184 = scmp.eq.s32.totalorder %s34, 0
      %p185 = por %p183, %p184
      %p186 = scmp.ne.s32.totalorder %s178, %s180
      %p187 = scmp.eq.s32.totalorder %s39, 1
      %p188 = por %p186, %p187
      %p189 = scmp.ne.s32.totalorder %s180, %s181
      %p190 = scmp.eq.s32.totalorder %s39, 0
      %p191 = por %p189, %p190
      %p192 = scmp.ne.s32.totalorder %s180, %s181
      %p193 = scmp.eq.s32.totalorder %s40, 1
      %p194 = por %p192, %p193
      %p196 = scmp.ne.s32.totalorder %s181, %s195
      %p197 = scmp.eq.s32.totalorder %s40, 0
      %p198 = por %p196, %p197
      %s200 = sadd.s32 %s199, 1
      %p203 = scmp.eq.s32.totalorder %s34, 1
      %p204 = scmp.ne.s32.totalorder %s199, %s201
      %p205 = scmp.eq.s32.totalorder %s34, 0
      %p206 = por %p204, %p205
      %p207 = scmp.ne.s32.totalorder %s199, %s201
      %p208 = scmp.eq.s32.totalorder %s39, 1
      %p209 = por %p207, %p208
      %p210 = scmp.ne.s32.totalorder %s201, %s202
      %p211 = scmp.eq.s32.totalorder %s39, 0
      %p212 = por %p210, %p211
      %p213 = scmp.ne.s32.totalorder %s201, %s202
      %p214 = scmp.eq.s32.totalorder %s40, 1
      %p215 = por %p213, %p214
      %p217 = scmp.ne.s32.totalorder %s202, %s216
      %p218 = scmp.eq.s32.totalorder %s40, 0
      %p219 = por %p217, %p218
      %s221 = sadd.s32 %s220, 1
      %p224 = scmp.eq.s32.totalorder %s34, 1
      %p225 = scmp.ne.s32.totalorder %s220, %s222
      %p226 = scmp.eq.s32.totalorder %s34, 0
      %p227 = por %p225, %p226
      %p228 = scmp.ne.s32.totalorder %s220, %s222
      %p229 = scmp.eq.s32.totalorder %s39, 1
      %p230 = por %p228, %p229
      %p231 = scmp.ne.s32.totalorder %s222, %s223
      %p232 = scmp.eq.s32.totalorder %s39, 0
      %p233 = por %p231, %p232
      %p234 = scmp.ne.s32.totalorder %s222, %s223
      %p235 = scmp.eq.s32.totalorder %s40, 1
      %p236 = por %p234, %p235
      %p238 = scmp.ne.s32.totalorder %s223, %s237
      %p239 = scmp.eq.s32.totalorder %s40, 0
      %p240 = por %p238, %p239
      %s242 = sadd.s32 %s241, 1
      %p245 = scmp.eq.s32.totalorder %s34, 1
      %p246 = scmp.ne.s32.totalorder %s241, %s243
      %p247 = scmp.eq.s32.totalorder %s34, 0
      %p248 = por %p246, %p247
      %p249 = scmp.ne.s32.totalorder %s241, %s243
      %p250 = scmp.eq.s32.totalorder %s39, 1
      %p251 = por %p249, %p250
      %p252 = scmp.ne.s32.totalorder %s243, %s244
      %p253 = scmp.eq.s32.totalorder %s39, 0
      %p254 = por %p252, %p253
      %p255 = scmp.ne.s32.totalorder %s243, %s244
      %p256 = scmp.eq.s32.totalorder %s40, 1
      %p257 = por %p255, %p256
      %p259 = scmp.ne.s32.totalorder %s244, %s258
      %p260 = scmp.eq.s32.totalorder %s40, 0
      %p261 = por %p259, %p260
      %s263 = sadd.s32 %s262, 1
      %p266 = scmp.eq.s32.totalorder %s34, 1
      %p267 = scmp.ne.s32.totalorder %s262, %s264
      %p268 = scmp.eq.s32.totalorder %s34, 0
      %p269 = por %p267, %p268
      %p270 = scmp.ne.s32.totalorder %s262, %s264
      %p271 = scmp.eq.s32.totalorder %s39, 1
      %p272 = por %p270, %p271
      %p273 = scmp.ne.s32.totalorder %s264, %s265
      %p274 = scmp.eq.s32.totalorder %s39, 0
      %p275 = por %p273, %p274
      %p276 = scmp.ne.s32.totalorder %s264, %s265
      %p277 = scmp.eq.s32.totalorder %s40, 1
      %p278 = por %p276, %p277
      %p280 = scmp.ne.s32.totalorder %s265, %s279
      %p281 = scmp.eq.s32.totalorder %s40, 0
      %p282 = por %p280, %p281
      %s284 = sadd.s32 %s283, 1
      %p287 = scmp.eq.s32.totalorder %s34, 1
      %p288 = scmp.ne.s32.totalorder %s283, %s285
      %p289 = scmp.eq.s32.totalorder %s34, 0
      %p290 = por %p288, %p289
      %p291 = scmp.ne.s32.totalorder %s283, %s285
      %p292 = scmp.eq.s32.totalorder %s39, 1
      %p293 = por %p291, %p292
      %p294 = scmp.ne.s32.totalorder %s285, %s286
      %p295 = scmp.eq.s32.totalorder %s39, 0
      %p296 = por %p294, %p295
      %p297 = scmp.ne.s32.totalorder %s285, %s286
      %p298 = scmp.eq.s32.totalorder %s40, 1
      %p299 = por %p297, %p298
      %p301 = scmp.ne.s32.totalorder %s286, %s300
      %p302 = scmp.eq.s32.totalorder %s40, 0
      %p303 = por %p301, %p302
      %s305 = sadd.s32 %s304, 1
      %p308 = scmp.eq.s32.totalorder %s34, 1
      %p309 = scmp.ne.s32.totalorder %s304, %s306
      %p310 = scmp.eq.s32.totalorder %s34, 0
      %p311 = por %p309, %p310
      %p312 = scmp.ne.s32.totalorder %s304, %s306
      %p313 = scmp.eq.s32.totalorder %s39, 1
      %p314 = por %p312, %p313
      %p315 = scmp.ne.s32.totalorder %s306, %s307
      %p316 = scmp.eq.s32.totalorder %s39, 0
      %p317 = por %p315, %p316
      %p318 = scmp.ne.s32.totalorder %s306, %s307
      %p319 = scmp.eq.s32.totalorder %s40, 1
      %p320 = por %p318, %p319
      %p322 = scmp.ne.s32.totalorder %s307, %s321
      %p323 = scmp.eq.s32.totalorder %s40, 0
      %p324 = por %p322, %p323
      %s326 = sadd.s32 %s325, 1
      %p329 = scmp.eq.s32.totalorder %s34, 1
      %p330 = scmp.ne.s32.totalorder %s325, %s327
      %p331 = scmp.eq.s32.totalorder %s34, 0
      %p332 = por %p330, %p331
      %p333 = scmp.ne.s32.totalorder %s325, %s327
      %p334 = scmp.eq.s32.totalorder %s39, 1
      %p335 = por %p333, %p334
      %p336 = scmp.ne.s32.totalorder %s327, %s328
      %p337 = scmp.eq.s32.totalorder %s39, 0
      %p338 = por %p336, %p337
      %p339 = scmp.ne.s32.totalorder %s327, %s328
      %p340 = scmp.eq.s32.totalorder %s40, 1
      %p341 = por %p339, %p340
      %p343 = scmp.ne.s32.totalorder %s328, %s342
      %p344 = scmp.eq.s32.totalorder %s40, 0
      %p345 = por %p343, %p344
      %s347 = sadd.s32 %s346, 1
      %p350 = scmp.eq.s32.totalorder %s34, 1
      %p351 = scmp.ne.s32.totalorder %s346, %s348
      %p352 = scmp.eq.s32.totalorder %s34, 0
      %p353 = por %p351, %p352
      %p354 = scmp.ne.s32.totalorder %s346, %s348
      %p355 = scmp.eq.s32.totalorder %s39, 1
      %p356 = por %p354, %p355
      %p357 = scmp.ne.s32.totalorder %s348, %s349
      %p358 = scmp.eq.s32.totalorder %s39, 0
      %p359 = por %p357, %p358
      %p360 = scmp.ne.s32.totalorder %s348, %s349
      %p361 = scmp.eq.s32.totalorder %s40, 1
      %p362 = por %p360, %p361
      %p364 = scmp.ne.s32.totalorder %s349, %s363
      %p365 = scmp.eq.s32.totalorder %s40, 0
      %p366 = por %p364, %p365
      %s368 = sadd.s32 %s367, 1
      %p371 = scmp.eq.s32.totalorder %s34, 1
      %p372 = scmp.ne.s32.totalorder %s367, %s369
      %p373 = scmp.eq.s32.totalorder %s34, 0
      %p374 = por %p372, %p373
      %p375 = scmp.ne.s32.totalorder %s367, %s369
      %p376 = scmp.eq.s32.totalorder %s39, 1
      %p377 = por %p375, %p376
      %p378 = scmp.ne.s32.totalorder %s369, %s370
      %p379 = scmp.eq.s32.totalorder %s39, 0
      %p380 = por %p378, %p379
      %p381 = scmp.ne.s32.totalorder %s369, %s370
      %p382 = scmp.eq.s32.totalorder %s40, 1
      %p383 = por %p381, %p382
      %p385 = scmp.ne.s32.totalorder %s370, %s384
      %p386 = scmp.eq.s32.totalorder %s40, 0
      %p387 = por %p385, %p386
      %s389 = sadd.s32 %s388, 1
      %p392 = scmp.eq.s32.totalorder %s34, 1
      %p393 = scmp.ne.s32.totalorder %s388, %s390
      %p394 = scmp.eq.s32.totalorder %s34, 0
      %p395 = por %p393, %p394
      %p396 = scmp.ne.s32.totalorder %s388, %s390
      %p397 = scmp.eq.s32.totalorder %s39, 1
      %p398 = por %p396, %p397
      %p399 = scmp.ne.s32.totalorder %s390, %s391
      %p400 = scmp.eq.s32.totalorder %s39, 0
      %p401 = por %p399, %p400
      %p402 = scmp.ne.s32.totalorder %s390, %s391
      %p403 = scmp.eq.s32.totalorder %s40, 1
      %p404 = por %p402, %p403
      %p406 = scmp.ne.s32.totalorder %s391, %s405
      %p407 = scmp.eq.s32.totalorder %s40, 0
      %p408 = por %p406, %p407
      %s409 = ssub.s32 %s41, %s53
      %s410 = ssub.s32 %s42, %s49
      %s411 = sor.u32 %s409, %s410
      %p412 = scmp.eq.s32.totalorder %s411, 0
      %s414 = sadd.s32 %s413, 1
      %s415 = scalar_select %p412, %s413, %s414
      %p418 = pneg %p412
      %p419 = scmp.eq.s32.totalorder %s34, 1
      %p420 = por %p418, %p419
      %p421 = scmp.ne.s32.totalorder %s413, %s416
      %p422 = scmp.eq.s32.totalorder %s34, 0
      %p423 = por %p421, %p422
      %p424 = scmp.ne.s32.totalorder %s413, %s416
      %p425 = scmp.eq.s32.totalorder %s39, 1
      %p426 = por %p424, %p425
      %p427 = scmp.ne.s32.totalorder %s416, %s417
      %p428 = scmp.eq.s32.totalorder %s39, 0
      %p429 = por %p427, %p428
      %p430 = scmp.ne.s32.totalorder %s416, %s417
      %p431 = scmp.eq.s32.totalorder %s40, 1
      %p432 = por %p430, %p431
      %p434 = scmp.ne.s32.totalorder %s417, %s433
      %p435 = scmp.eq.s32.totalorder %s40, 0
      %p436 = por %p434, %p435
      %s437 = ssub.s32 %s41, %s53
      %s438 = ssub.s32 %s42, %s49
      %s439 = sor.u32 %s437, %s438
      %p440 = scmp.eq.s32.totalorder %s439, 0
      %s442 = sadd.s32 %s441, 1
      %s443 = scalar_select %p440, %s441, %s442
      %p446 = pneg %p440
      %p447 = scmp.eq.s32.totalorder %s34, 1
      %p448 = por %p446, %p447
      %p449 = scmp.ne.s32.totalorder %s441, %s444
      %p450 = scmp.eq.s32.totalorder %s34, 0
      %p451 = por %p449, %p450
      %p452 = scmp.ne.s32.totalorder %s441, %s444
      %p453 = scmp.eq.s32.totalorder %s39, 1
      %p454 = por %p452, %p453
      %p455 = scmp.ne.s32.totalorder %s444, %s445
      %p456 = scmp.eq.s32.totalorder %s39, 0
      %p457 = por %p455, %p456
      %p458 = scmp.ne.s32.totalorder %s444, %s445
      %p459 = scmp.eq.s32.totalorder %s40, 1
      %p460 = por %p458, %p459
      %p462 = scmp.ne.s32.totalorder %s445, %s461
      %p463 = scmp.eq.s32.totalorder %s40, 0
      %p464 = por %p462, %p463
      %s465 = ssub.s32 %s41, %s53
      %p466 = scmp.eq.s32.totalorder %s465, 0
      %s468 = sadd.s32 %s467, 1
      %s469 = scalar_select %p466, %s467, %s468
      %p472 = pneg %p466
      %p473 = scmp.eq.s32.totalorder %s34, 1
      %p474 = por %p472, %p473
      %p475 = scmp.ne.s32.totalorder %s467, %s470
      %p476 = scmp.eq.s32.totalorder %s34, 0
      %p477 = por %p475, %p476
      %p478 = scmp.ne.s32.totalorder %s467, %s470
      %p479 = scmp.eq.s32.totalorder %s39, 1
      %p480 = por %p478, %p479
      %p481 = scmp.ne.s32.totalorder %s470, %s471
      %p482 = scmp.eq.s32.totalorder %s39, 0
      %p483 = por %p481, %p482
      %p484 = scmp.ne.s32.totalorder %s470, %s471
      %p485 = scmp.eq.s32.totalorder %s40, 1
      %p486 = por %p484, %p485
      %p488 = scmp.ne.s32.totalorder %s471, %s487
      %p489 = scmp.eq.s32.totalorder %s40, 0
      %p490 = por %p488, %p489
      %p491 = scmp.le.s32.totalorder 1, %s34
      %p492 = scmp.lt.s32.totalorder %s34, 3
      %p493 = pnand %p491, %p492
      %p494 = pneg %p493
      // Predicated region
      $region9: #{tpu_custom_call.1} parent=5 // pred_check
        _
      $region10: #{tpu_custom_call.1} parent=5 // pred_check_branch
        %496 = sbr.rel (%p493) target = $region12
      $region11: #{tpu_custom_call.1} parent=5 // pred_region
        %s497 = ssub.s32 %s34, 1
        // Predicated region
        $region13: #{tpu_custom_call.1} parent=11 // pred_check
          %p498 = pneg %p149
        $region14: #{tpu_custom_call.1} parent=11 // pred_check_branch
          %500 = sbr.rel (%p498) target = $region16
        $region15: #{tpu_custom_call.1} parent=11 // pred_region
          _
        $region16: #{tpu_custom_call.1} parent=11 // pred_fallthru
          _
        // Predicated region
        $region17: #{tpu_custom_call.1} parent=11 // pred_check
          %p501 = pneg %p170
        $region18: #{tpu_custom_call.1} parent=11 // pred_check_branch
          %503 = sbr.rel (%p501) target = $region20
        $region19: #{tpu_custom_call.1} parent=11 // pred_region
          %s505 = ssub.s32 16, 16
          %506 = vsyncadd [#allocation10], %s505
          %s508 = sshll.u32 [#allocation9], 4
          %s509 = int_to_ptr.vmem [resolvable:$true] %s508
          %511 = dma.hbm_to_vmem [thread:$0]  %s4, 16, %s509, [#allocation10]
        $region20: #{tpu_custom_call.1} parent=11 // pred_fallthru
          _
        // Predicated region
        $region21: #{tpu_custom_call.1} parent=11 // pred_check
          %p512 = pneg %p191
        $region22: #{tpu_custom_call.1} parent=11 // pred_check_branch
          %514 = sbr.rel (%p512) target = $region24
        $region23: #{tpu_custom_call.1} parent=11 // pred_region
          _
        $region24: #{tpu_custom_call.1} parent=11 // pred_fallthru
          _
        // Predicated region
        $region25: #{tpu_custom_call.1} parent=11 // pred_check
          %p515 = pneg %p212
        $region26: #{tpu_custom_call.1} parent=11 // pred_check_branch
          %517 = sbr.rel (%p515) target = $region28
        $region27: #{tpu_custom_call.1} parent=11 // pred_region
          %s519 = ssub.s32 256, 256
          %520 = vsyncadd [#allocation13], %s519
          %s521 = sshll.u32 [#allocation12], 4
          %s522 = int_to_ptr.vmem [resolvable:$true] %s521
          %527 = dma.hbm_to_vmem [thread:$0]  %s6, 256, %s522, [#allocation13], 64, 64, 4
        $region28: #{tpu_custom_call.1} parent=11 // pred_fallthru
          _
        // Predicated region
        $region29: #{tpu_custom_call.1} parent=11 // pred_check
          %p528 = pneg %p233
        $region30: #{tpu_custom_call.1} parent=11 // pred_check_branch
          %530 = sbr.rel (%p528) target = $region32
        $region31: #{tpu_custom_call.1} parent=11 // pred_region
          %s532 = ssub.s32 64, 64
          %533 = vsyncadd [#allocation13], %s532
          %s535 = sshll.u32 [#allocation14], 4
          %s536 = int_to_ptr.vmem [resolvable:$true] %s535
          %538 = dma.hbm_to_vmem [thread:$0]  %s7, 64, %s536, [#allocation13]
        $region32: #{tpu_custom_call.1} parent=11 // pred_fallthru
          _
        // Predicated region
        $region33: #{tpu_custom_call.1} parent=11 // pred_check
          %p539 = pneg %p254
        $region34: #{tpu_custom_call.1} parent=11 // pred_check_branch
          %541 = sbr.rel (%p539) target = $region36
        $region35: #{tpu_custom_call.1} parent=11 // pred_region
          %s543 = ssub.s32 16, 16
          %544 = vsyncadd [#allocation16], %s543
          %s546 = sshll.u32 [#allocation15], 4
          %s547 = int_to_ptr.vmem [resolvable:$true] %s546
          %549 = dma.hbm_to_vmem [thread:$0]  %s8, 16, %s547, [#allocation16]
        $region36: #{tpu_custom_call.1} parent=11 // pred_fallthru
          _
        // Predicated region
        $region37: #{tpu_custom_call.1} parent=11 // pred_check
          %p550 = pneg %p275
        $region38: #{tpu_custom_call.1} parent=11 // pred_check_branch
          %552 = sbr.rel (%p550) target = $region40
        $region39: #{tpu_custom_call.1} parent=11 // pred_region
          _
        $region40: #{tpu_custom_call.1} parent=11 // pred_fallthru
          _
        // Predicated region
        $region41: #{tpu_custom_call.1} parent=11 // pred_check
          %p553 = pneg %p296
        $region42: #{tpu_custom_call.1} parent=11 // pred_check_branch
          %555 = sbr.rel (%p553) target = $region44
        $region43: #{tpu_custom_call.1} parent=11 // pred_region
          _
        $region44: #{tpu_custom_call.1} parent=11 // pred_fallthru
          _
        // Predicated region
        $region45: #{tpu_custom_call.1} parent=11 // pred_check
          %p556 = pneg %p317
        $region46: #{tpu_custom_call.1} parent=11 // pred_check_branch
          %558 = sbr.rel (%p556) target = $region48
        $region47: #{tpu_custom_call.1} parent=11 // pred_region
          _
        $region48: #{tpu_custom_call.1} parent=11 // pred_fallthru
          _
        // Predicated region
        $region49: #{tpu_custom_call.1} parent=11 // pred_check
          %p559 = pneg %p338
        $region50: #{tpu_custom_call.1} parent=11 // pred_check_branch
          %561 = sbr.rel (%p559) target = $region52
        $region51: #{tpu_custom_call.1} parent=11 // pred_region
          _
        $region52: #{tpu_custom_call.1} parent=11 // pred_fallthru
          _
        // Predicated region
        $region53: #{tpu_custom_call.1} parent=11 // pred_check
          %p562 = pneg %p359
        $region54: #{tpu_custom_call.1} parent=11 // pred_check_branch
          %564 = sbr.rel (%p562) target = $region56
        $region55: #{tpu_custom_call.1} parent=11 // pred_region
          %s566 = ssub.s32 256, 256
          %567 = vsyncadd [#allocation16], %s566
          %s568 = sshll.u32 [#allocation17], 4
          %s569 = int_to_ptr.vmem [resolvable:$true] %s568
          %574 = dma.hbm_to_vmem [thread:$0]  %s13, 256, %s569, [#allocation16], 128, 128, 8
        $region56: #{tpu_custom_call.1} parent=11 // pred_fallthru
          _
        // Predicated region
        $region57: #{tpu_custom_call.1} parent=11 // pred_check
          %p575 = pneg %p380
        $region58: #{tpu_custom_call.1} parent=11 // pred_check_branch
          %577 = sbr.rel (%p575) target = $region60
        $region59: #{tpu_custom_call.1} parent=11 // pred_region
          _
        $region60: #{tpu_custom_call.1} parent=11 // pred_fallthru
          _
        // Predicated region
        $region61: #{tpu_custom_call.1} parent=11 // pred_check
          %p578 = pneg %p401
        $region62: #{tpu_custom_call.1} parent=11 // pred_check_branch
          %580 = sbr.rel (%p578) target = $region64
        $region63: #{tpu_custom_call.1} parent=11 // pred_region
          _
        $region64: #{tpu_custom_call.1} parent=11 // pred_fallthru
          _
      $region12: #{tpu_custom_call.1} parent=5 // pred_fallthru
        _
      %p581 = scmp.lt.s32.totalorder %s34, 2
      // Predicated region
      $region65: #{tpu_custom_call.1} parent=5 // pred_check
        %p582 = pneg %p581
      $region66: #{tpu_custom_call.1} parent=5 // pred_check_branch
        %584 = sbr.rel (%p582) target = $region68
      $region67: #{tpu_custom_call.1} parent=5 // pred_region
        // Predicated region
        $region69: #{tpu_custom_call.1} parent=67 // pred_check
          %p585 = pneg %p68
        $region70: #{tpu_custom_call.1} parent=67 // pred_check_branch
          %587 = sbr.rel (%p585) target = $region72
        $region71: #{tpu_custom_call.1} parent=67 // pred_region
          %p588 = scmp.lt.s32.totalorder %s41, 1
          %s589 = scalar_select %p588, %s41, 1
          %p590 = scmp.lt.s32.totalorder %s42, 0
          %s591 = scalar_select %p590, %s42, 0
          %s592 = sadd.s32 %s591, %s589
          %s593 = smul.addr %s592, 8
          %s594 = scalar_lea.vmem %s0, %s593
        $region72: #{tpu_custom_call.1} parent=67 // pred_fallthru
          _
        // Predicated region
        $region73: #{tpu_custom_call.1} parent=67 // pred_check
          %p595 = pneg %p96
        $region74: #{tpu_custom_call.1} parent=67 // pred_check_branch
          %597 = sbr.rel (%p595) target = $region76
        $region75: #{tpu_custom_call.1} parent=67 // pred_region
          %p598 = scmp.lt.s32.totalorder %s41, 1
          %s599 = scalar_select %p598, %s41, 1
          %p600 = scmp.lt.s32.totalorder %s42, 0
          %s601 = scalar_select %p600, %s42, 0
          %s602 = sadd.s32 %s601, %s599
          %s603 = smul.addr %s602, 8
          %s604 = scalar_lea.vmem %s1, %s603
        $region76: #{tpu_custom_call.1} parent=67 // pred_fallthru
          _
        // Predicated region
        $region77: #{tpu_custom_call.1} parent=67 // pred_check
          %p605 = pneg %p122
        $region78: #{tpu_custom_call.1} parent=67 // pred_check_branch
          %607 = sbr.rel (%p605) target = $region80
        $region79: #{tpu_custom_call.1} parent=67 // pred_region
          %p608 = scmp.lt.s32.totalorder %s41, 1
          %s609 = scalar_select %p608, %s41, 1
          %s610 = smul.addr %s609, 2
          %s611 = smul.addr %s610, 8
          %s612 = scalar_lea.vmem %s2, %s611
        $region80: #{tpu_custom_call.1} parent=67 // pred_fallthru
          _
      $region68: #{tpu_custom_call.1} parent=5 // pred_fallthru
        _
      %p613 = scmp.le.s32.totalorder 1, %s34
      %p614 = scmp.lt.s32.totalorder %s34, 3
      %p615 = pnand %p613, %p614
      %p616 = pneg %p615
      // Predicated region
      $region81: #{tpu_custom_call.1} parent=5 // pred_check
        _
      $region82: #{tpu_custom_call.1} parent=5 // pred_check_branch
        %618 = sbr.rel (%p615) target = $region84
      $region83: #{tpu_custom_call.1} parent=5 // pred_region
        %s619 = ssub.s32 %s34, 1
        // Predicated region
        $region85: #{tpu_custom_call.1} parent=83 // pred_check
          %p620 = pneg %p170
        $region86: #{tpu_custom_call.1} parent=83 // pred_check_branch
          %622 = sbr.rel (%p620) target = $region88
        $region87: #{tpu_custom_call.1} parent=83 // pred_region
          %623 = dma.done [#allocation10], 16
        $region88: #{tpu_custom_call.1} parent=83 // pred_fallthru
          _
        // Predicated region
        $region89: #{tpu_custom_call.1} parent=83 // pred_check
          %p624 = pneg %p212
        $region90: #{tpu_custom_call.1} parent=83 // pred_check_branch
          %626 = sbr.rel (%p624) target = $region92
        $region91: #{tpu_custom_call.1} parent=83 // pred_region
          %627 = dma.done [#allocation13], 256
        $region92: #{tpu_custom_call.1} parent=83 // pred_fallthru
          _
        // Predicated region
        $region93: #{tpu_custom_call.1} parent=83 // pred_check
          %p628 = pneg %p233
        $region94: #{tpu_custom_call.1} parent=83 // pred_check_branch
          %630 = sbr.rel (%p628) target = $region96
        $region95: #{tpu_custom_call.1} parent=83 // pred_region
          %631 = dma.done [#allocation13], 64
        $region96: #{tpu_custom_call.1} parent=83 // pred_fallthru
          _
        // Predicated region
        $region97: #{tpu_custom_call.1} parent=83 // pred_check
          %p632 = pneg %p254
        $region98: #{tpu_custom_call.1} parent=83 // pred_check_branch
          %634 = sbr.rel (%p632) target = $region100
        $region99: #{tpu_custom_call.1} parent=83 // pred_region
          %635 = dma.done [#allocation16], 16
        $region100: #{tpu_custom_call.1} parent=83 // pred_fallthru
          _
        // Predicated region
        $region101: #{tpu_custom_call.1} parent=83 // pred_check
          %p636 = pneg %p359
        $region102: #{tpu_custom_call.1} parent=83 // pred_check_branch
          %638 = sbr.rel (%p636) target = $region104
        $region103: #{tpu_custom_call.1} parent=83 // pred_region
          %639 = dma.done [#allocation16], 256
        $region104: #{tpu_custom_call.1} parent=83 // pred_fallthru
          _
        %p640 = scmp.lt.s32.totalorder %s43, 1
        %s641 = scalar_select %p640, %s43, 1
        %p642 = scmp.lt.s32.totalorder %s44, 0
        %s643 = scalar_select %p642, %s44, 0
        %s644 = sadd.s32 %s643, %s641
        %s645 = smul.addr %s644, 8
        %s646 = scalar_lea.vmem %s0, %s645
        %p647 = pneg %p74
        %p648 = pneg %p71
        %p649 = scmp.lt.s32.totalorder %s43, 1
        %s650 = scalar_select %p649, %s43, 1
        %p651 = scmp.lt.s32.totalorder %s44, 0
        %s652 = scalar_select %p651, %s44, 0
        %s653 = sadd.s32 %s652, %s650
        %s654 = smul.addr %s653, 8
        %s655 = scalar_lea.vmem %s1, %s654
        %p656 = pneg %p102
        %p657 = pneg %p99
        %p658 = scmp.lt.s32.totalorder %s43, 1
        %s659 = scalar_select %p658, %s43, 1
        %s660 = smul.addr %s659, 2
        %s661 = smul.addr %s660, 8
        %s662 = scalar_lea.vmem %s2, %s661
        %p663 = pneg %p128
        %p664 = pneg %p125
        %p665 = pneg %p149
        %p666 = pneg %p146
        %p667 = pneg %p170
        %p668 = pneg %p167
        %p669 = pneg %p191
        %p670 = pneg %p188
        %p671 = pneg %p212
        %p672 = pneg %p209
        %p673 = pneg %p233
        %p674 = pneg %p230
        %p675 = pneg %p254
        %p676 = pneg %p251
        %p677 = pneg %p275
        %p678 = pneg %p272
        %p679 = pneg %p296
        %p680 = pneg %p293
        %p681 = pneg %p317
        %p682 = pneg %p314
        %p683 = pneg %p338
        %p684 = pneg %p335
        %p685 = pneg %p359
        %p686 = pneg %p356
        %p687 = pneg %p380
        %p688 = pneg %p377
        %p689 = pneg %p401
        %p690 = pneg %p398
        %p691 = pneg %p429
        %p692 = pneg %p426
        %s693 = sand.u32 %s416, 1
        %s694 = scalar_lea.sflag [#allocation11], %s693
        %s695 = sand.u32 %s416, 1
        %s696 = smul.addr %s695, 8
        %s697 = scalar_lea.vmem [#allocation18], %s696
        %p698 = pneg %p457
        %p699 = pneg %p454
        %s700 = sand.u32 %s39, 1
        %s701 = scalar_lea.sflag [#allocation20], %s700
        %s702 = sand.u32 %s444, 1
        %s703 = smul.addr %s702, 8
        %s704 = scalar_lea.vmem [#allocation19], %s703
        %p705 = pneg %p483
        %p706 = pneg %p480
        %s707 = sand.u32 %s39, 1
        %s708 = scalar_lea.sflag [#allocation20], %s707
        %s709 = sand.u32 %s470, 1
        %s710 = smul.addr %s709, 16
        %s711 = scalar_lea.vmem [#allocation21], %s710
        %p712 = scmp.lt.s32.totalorder %s43, 1
        %s713 = scalar_select %p712, %s43, 1
        %p714 = scmp.lt.s32.totalorder %s44, 0
        %s715 = scalar_select %p714, %s44, 0
        %s716 = sadd.s32 %s715, %s713
        %s717 = smul.addr %s716, 8
        %s718 = scalar_lea.vmem %s0, %s717
        %p719 = scmp.lt.s32.totalorder %s43, 1
        %s720 = scalar_select %p719, %s43, 1
        %p721 = scmp.lt.s32.totalorder %s44, 0
        %s722 = scalar_select %p721, %s44, 0
        %s723 = sadd.s32 %s722, %s720
        %s724 = smul.addr %s723, 8
        %s725 = scalar_lea.vmem %s1, %s724
        %p726 = scmp.lt.s32.totalorder %s43, 1
        %s727 = scalar_select %p726, %s43, 1
        %s728 = smul.addr %s727, 2
        %s729 = smul.addr %s728, 8
        %s730 = scalar_lea.vmem %s2, %s729
        %v732 = vld [vmem:[%s718] sm:$0xff]
        %v733 = vld [vmem:[%s725] sm:$0xff]
        %v734 = vadd.f32 %v732, %v733
        %vm735 = vcmask 261120
        %736 = vst.msk [vmem:[%s704] sm:$0xff] %vm735, %v734
        %v737 = vsel %vm735, %v734, 0.0
        %738 = vadd.xlane.f32.xlu0 %v737
        %v739 = vpop.xlane.xlu0 %738
        %v740 = vrcp.pop 32.0
        %v741 = vmul.f32 %v739, %v740
        %v742 = vsub.f32 %v734, %v741
        %v743 = vmul.f32 %v742, %v742
        %v744 = vsel %vm735, %v743, 0.0
        %745 = vadd.xlane.f32.xlu0 %v744
        %v746 = vpop.xlane.xlu0 %745
        %v747 = vmul.f32 %v746, %v740
        %v748 = vadd.f32 %v747, 1e-05
        %v749 = vrsqrt.pop %v748
        %v750 = vmul.f32 %v742, %v749
        %v751 = vld [vmem:[%s3] sm:$0x1]
        %v753 = vlaneseq
        %v754 = vshrl.u32 %v753, 7
        %v755 = vsub.s32 0, %v754
        %v756 = vrot.slane %v751, %v755
        %v758 = vmul.f32 %v750, %v756
        %v759 = vld [vmem:[#allocation9] sm:$0x1]
        %v761 = vlaneseq
        %v762 = vshrl.u32 %v761, 7
        %v763 = vsub.s32 0, %v762
        %v764 = vrot.slane %v759, %v763
        %v766 = vadd.f32 %v758, %v764
        %v767 = vpack.c.bf16 %v766, %v766
        %p768 = scmp.eq.s32.totalorder %s44, 0
        // Predicated region
        $region105: #{tpu_custom_call.1} parent=83 // pred_check
          %p769 = pneg %p768
        $region106: #{tpu_custom_call.1} parent=83 // pred_check_branch
          %771 = sbr.rel (%p769) target = $region108
        $region107: #{tpu_custom_call.1} parent=83 // pred_region
          %vm772 = vcmask 518144
          %773 = vst.msk [vmem:[#allocation8] sm:$0x7] %vm772, 0.0
          %v774 = vld [vmem:[%s730] sm:$0xff]
          %v775 = vld [vmem:[%s730 + $0x8] sm:$0xff]
          %vm776 = vcmask 523264
          %777 = vst.msk [vmem:[#allocation7] sm:$0xff] %vm776, %v774
          %778 = vst.msk [vmem:[#allocation7 + $0x8] sm:$0xff] %vm776, %v775
        $region108: #{tpu_custom_call.1} parent=83 // pred_fallthru
          _
        %v779 = vld [vmem:[%s5] sm:$0xf]
        %v780 = vld [vmem:[%s5 + $0x4] sm:$0xf]
        %v781 = vld [vmem:[%s5 + $0x8] sm:$0xf]
        %v782 = vld [vmem:[%s5 + $0xc] sm:$0xf]
        %v787 = vunpack.c.l.b16 %v779
        %v788 = vunpack.c.l.b16 %v780
        %v789 = vunpack.c.l.b16 %v781
        %v790 = vunpack.c.l.b16 %v782
        %v791 = vpack.c.b16 %v788, %v787
        %v792 = vpack.c.b16 %v790, %v789
        %v796 = vsel %vm735, %v767, 0
        %798 = vmatprep.subr.bf16.mxu0 0
        %799 = vmatpush1.bf16.msra.mxu0 0
        %800 = vmatprep.subr.bf16.mxu0 0
        %801 = vmatpush1.bf16.msra.mxu0 0
        %802 = vmatprep.subr.bf16.mxu0 0
        %803 = vmatpush1.bf16.msra.mxu0 0
        %804 = vmatprep.subr.bf16.mxu0 0
        %805 = vmatpush1.bf16.msra.mxu0 0
        %806 = vmatprep.subr.bf16.mxu0 0
        %807 = vmatpush1.bf16.msra.mxu0 0
        %808 = vmatprep.subr.bf16.mxu0 0
        %809 = vmatpush1.bf16.msra.mxu0 0
        %810 = vmatprep.subr.bf16.mxu0 0
        %811 = vmatpush1.bf16.msra.mxu0 %v792
        %812 = vmatprep.subr.bf16.mxu0 0
        %813 = vmatpush1.bf16.msra.mxu0 %v791
        %814 = vmatprep.subr.bf16.mxu0 0
        %815 = vmatpush2.bf16.msra.mxu0 0
        %816 = vmatprep.subr.bf16.mxu0 0
        %817 = vmatpush2.bf16.msra.mxu0 0
        %818 = vmatprep.subr.bf16.mxu0 0
        %819 = vmatpush2.bf16.msra.mxu0 0
        %820 = vmatprep.subr.bf16.mxu0 0
        %821 = vmatpush2.bf16.msra.mxu0 0
        %822 = vmatprep.subr.bf16.mxu0 0
        %823 = vmatpush2.bf16.msra.mxu0 0
        %824 = vmatprep.subr.bf16.mxu0 0
        %825 = vmatpush2.bf16.msra.mxu0 0
        %826 = vmatprep.subr.bf16.mxu0 0
        %827 = vmatpush2.bf16.msra.mxu0 0
        %828 = vmatprep.subr.bf16.mxu0 0
        %829 = vmatpush2.bf16.msra.mxu0 0
        %830 = vmatprep.mubr.bf16.mxu0 0
        %831 = vmatmul.mubr.bf16.gmra.mxu0 %v796
        %v832 = vpop.f32.mrf.mxu0
        %v833 = vadd.f32 0.0, %v832
        %v834 = vpop.f32.mrf.mxu0
        %v835 = vpop.f32.mrf.mxu0
        %v836 = vpop.f32.mrf.mxu0
        %837 = vdwg.mxu0
        %v838 = vld [vmem:[#allocation12] sm:$0xf]
        %v839 = vld [vmem:[#allocation12 + $0x4] sm:$0xf]
        %v840 = vld [vmem:[#allocation12 + $0x8] sm:$0xf]
        %v841 = vld [vmem:[#allocation12 + $0xc] sm:$0xf]
        %v846 = vunpack.c.l.b16 %v838
        %v847 = vunpack.c.l.b16 %v839
        %v848 = vunpack.c.l.b16 %v840
        %v849 = vunpack.c.l.b16 %v841
        %v850 = vpack.c.b16 %v847, %v846
        %v851 = vpack.c.b16 %v849, %v848
        %854 = vmatprep.subr.bf16.mxu0 0
        %855 = vmatpush1.bf16.msra.mxu0 0
        %856 = vmatprep.subr.bf16.mxu0 0
        %857 = vmatpush1.bf16.msra.mxu0 0
        %858 = vmatprep.subr.bf16.mxu0 0
        %859 = vmatpush1.bf16.msra.mxu0 0
        %860 = vmatprep.subr.bf16.mxu0 0
        %861 = vmatpush1.bf16.msra.mxu0 0
        %862 = vmatprep.subr.bf16.mxu0 0
        %863 = vmatpush1.bf16.msra.mxu0 0
        %864 = vmatprep.subr.bf16.mxu0 0
        %865 = vmatpush1.bf16.msra.mxu0 0
        %866 = vmatprep.subr.bf16.mxu0 0
        %867 = vmatpush1.bf16.msra.mxu0 %v851
        %868 = vmatprep.subr.bf16.mxu0 0
        %869 = vmatpush1.bf16.msra.mxu0 %v850
        %870 = vmatprep.subr.bf16.mxu0 0
        %871 = vmatpush2.bf16.msra.mxu0 0
        %872 = vmatprep.subr.bf16.mxu0 0
        %873 = vmatpush2.bf16.msra.mxu0 0
        %874 = vmatprep.subr.bf16.mxu0 0
        %875 = vmatpush2.bf16.msra.mxu0 0
        %876 = vmatprep.subr.bf16.mxu0 0
        %877 = vmatpush2.bf16.msra.mxu0 0
        %878 = vmatprep.subr.bf16.mxu0 0
        %879 = vmatpush2.bf16.msra.mxu0 0
        %880 = vmatprep.subr.bf16.mxu0 0
        %881 = vmatpush2.bf16.msra.mxu0 0
        %882 = vmatprep.subr.bf16.mxu0 0
        %883 = vmatpush2.bf16.msra.mxu0 0
        %884 = vmatprep.subr.bf16.mxu0 0
        %885 = vmatpush2.bf16.msra.mxu0 0
        %886 = vmatprep.mubr.bf16.mxu0 0
        %887 = vmatmul.mubr.bf16.gmra.mxu0 %v796
        %v888 = vpop.f32.mrf.mxu0
        %v889 = vadd.f32 0.0, %v888
        %v890 = vpop.f32.mrf.mxu0
        %v891 = vpop.f32.mrf.mxu0
        %v892 = vpop.f32.mrf.mxu0
        %893 = vdwg.mxu0
        %v894 = vpack.c.bf16 %v889, %v889
        %vm895 = vcmask 519168
        %896 = vst.msk [vmem:[#allocation5] sm:$0xf] %vm895, %v894
        %v897 = vld [vmem:[#allocation8] sm:$0x7]
        %vm898 = vcmask 518144
        %899 = vst.msk [vmem:[#allocation2 + $0x5] sm:$0x7] %vm898, %v897
        %vm900 = vcmask 523264
        %901 = vst.msk [vmem:[#allocation2 + $0x8] sm:$0xff] %vm900, %v833
        %vm902 = vcmask 523269
        %903 = vst.msk [vmem:[#allocation8 - $0x5] sm:$0xe0] %vm902, %v833
        %v904 = vld [vmem:[#allocation15] sm:$0x1]
        %v906 = vlaneseq
        %v907 = vshrl.u32 %v906, 7
        %v908 = vsub.s32 0, %v907
        %v909 = vrot.slane %v904, %v908
        %v911 = vld [vmem:[#allocation14 + $0x3] sm:$0x1]
        %v912 = vld [vmem:[#allocation2 + $0x8] sm:$0xff]
        %v913 = vlaneseq
        %v914 = vshrl.u32 %v913, 7
        %v915 = vsub.s32 0, %v914
        %v916 = vrot.slane %v911, %v915
        %v917 = vmul.f32 %v912, %v916
        %v918 = vadd.f32 %v909, %v917
        %v919 = vld [vmem:[#allocation14 + $0x2] sm:$0x1]
        %v920 = vld [vmem:[#allocation2 + $0x7] sm:$0xff]
        %v921 = vlaneseq
        %v922 = vshrl.u32 %v921, 7
        %v923 = vsub.s32 0, %v922
        %v924 = vrot.slane %v919, %v923
        %v925 = vmul.f32 %v920, %v924
        %v926 = vadd.f32 %v918, %v925
        %v927 = vld [vmem:[#allocation14 + $0x1] sm:$0x1]
        %v928 = vld [vmem:[#allocation2 + $0x6] sm:$0xff]
        %v929 = vlaneseq
        %v930 = vshrl.u32 %v929, 7
        %v931 = vsub.s32 0, %v930
        %v932 = vrot.slane %v927, %v931
        %v933 = vmul.f32 %v928, %v932
        %v934 = vadd.f32 %v926, %v933
        %v935 = vld [vmem:[#allocation14] sm:$0x1]
        %v936 = vld [vmem:[#allocation2 + $0x5] sm:$0xff]
        %v937 = vlaneseq
        %v938 = vshrl.u32 %v937, 7
        %v939 = vsub.s32 0, %v938
        %v940 = vrot.slane %v935, %v939
        %v941 = vmul.f32 %v936, %v940
        %v942 = vadd.f32 %v934, %v941
        %v943 = vsub.f32 0.0, %v942
        %v944 = vmul.f32 %v943, 1.442695
        %v945 = vpow.pop %v944
        %v946 = vadd.f32 %v945, 1.0
        %v947 = vrcp.pop %v946
        %v948 = vmul.f32 %v942, %v947
        %949 = vst.msk [vmem:[#allocation3] sm:$0xff] %vm900, %v948
        %v950 = vpack.c.bf16 %v948, %v948
        %v951 = vld [vmem:[%s9] sm:$0xf]
        %v952 = vld [vmem:[%s9 + $0x4] sm:$0xf]
        %v953 = vld [vmem:[%s9 + $0x8] sm:$0xf]
        %v954 = vld [vmem:[%s9 + $0xc] sm:$0xf]
        %v955 = vld [vmem:[%s9 + $0x10] sm:$0xf]
        %v956 = vld [vmem:[%s9 + $0x14] sm:$0xf]
        %v957 = vld [vmem:[%s9 + $0x18] sm:$0xf]
        %v958 = vld [vmem:[%s9 + $0x1c] sm:$0xf]
        %v967 = vunpack.c.l.b16 %v951
        %v968 = vunpack.c.l.b16 %v952
        %v969 = vunpack.c.l.b16 %v953
        %v970 = vunpack.c.l.b16 %v954
        %v971 = vunpack.c.l.b16 %v955
        %v972 = vunpack.c.l.b16 %v956
        %v973 = vunpack.c.l.b16 %v957
        %v974 = vunpack.c.l.b16 %v958
        %v975 = vpack.c.b16 %v968, %v967
        %v976 = vpack.c.b16 %v970, %v969
        %v977 = vpack.c.b16 %v972, %v971
        %v978 = vpack.c.b16 %v974, %v973
        %v984 = vsel %vm900, %v950, 0
        %986 = vmatprep.subr.bf16.mxu0 0
        %987 = vmatpush1.bf16.msra.mxu0 0
        %988 = vmatprep.subr.bf16.mxu0 0
        %989 = vmatpush1.bf16.msra.mxu0 0
        %990 = vmatprep.subr.bf16.mxu0 0
        %991 = vmatpush1.bf16.msra.mxu0 0
        %992 = vmatprep.subr.bf16.mxu0 0
        %993 = vmatpush1.bf16.msra.mxu0 0
        %994 = vmatprep.subr.bf16.mxu0 0
        %995 = vmatpush1.bf16.msra.mxu0 %v978
        %996 = vmatprep.subr.bf16.mxu0 0
        %997 = vmatpush1.bf16.msra.mxu0 %v977
        %998 = vmatprep.subr.bf16.mxu0 0
        %999 = vmatpush1.bf16.msra.mxu0 %v976
        %1000 = vmatprep.subr.bf16.mxu0 0
        %1001 = vmatpush1.bf16.msra.mxu0 %v975
        %1002 = vmatprep.subr.bf16.mxu0 0
        %1003 = vmatpush2.bf16.msra.mxu0 0
        %1004 = vmatprep.subr.bf16.mxu0 0
        %1005 = vmatpush2.bf16.msra.mxu0 0
        %1006 = vmatprep.subr.bf16.mxu0 0
        %1007 = vmatpush2.bf16.msra.mxu0 0
        %1008 = vmatprep.subr.bf16.mxu0 0
        %1009 = vmatpush2.bf16.msra.mxu0 0
        %1010 = vmatprep.subr.bf16.mxu0 0
        %1011 = vmatpush2.bf16.msra.mxu0 0
        %1012 = vmatprep.subr.bf16.mxu0 0
        %1013 = vmatpush2.bf16.msra.mxu0 0
        %1014 = vmatprep.subr.bf16.mxu0 0
        %1015 = vmatpush2.bf16.msra.mxu0 0
        %1016 = vmatprep.subr.bf16.mxu0 0
        %1017 = vmatpush2.bf16.msra.mxu0 0
        %1018 = vmatprep.mubr.bf16.mxu0 0
        %1019 = vmatmul.mubr.bf16.gmra.mxu0 %v984
        %v1020 = vpop.f32.mrf.mxu0
        %v1021 = vadd.f32 0.0, %v1020
        %v1022 = vpop.f32.mrf.mxu0
        %v1023 = vpop.f32.mrf.mxu0
        %v1024 = vpop.f32.mrf.mxu0
        %1025 = vdwg.mxu0
        %v1026 = vld [vmem:[%s11] sm:$0x3]
        %v1027 = vld [vmem:[%s12] sm:$0x1]
        %v1029 = vlaneseq
        %v1030 = vshrl.u32 %v1029, 7
        %v1031 = vsub.s32 0, %v1030
        %v1032 = vrot.slane %v1027, %v1031
        %vm1034 = vcmask 15360
        %v1036 = vsel %vm1034, %v1021, 0
        %vm1038 = vcmask 1041408
        %v1040 = vsel %vm1038, %v1026, 0
        %1042 = vmatprep.subr.mxu0 0.0
        %1043 = vmatpush1.msra.mxu0 0.0
        %1044 = vmatprep.subr.mxu0 0.0
        %1045 = vmatpush1.msra.mxu0 0.0
        %1046 = vmatprep.subr.mxu0 0.0
        %1047 = vmatpush1.msra.mxu0 0.0
        %1048 = vmatprep.subr.mxu0 0.0
        %1049 = vmatpush1.msra.mxu0 0.0
        %1050 = vmatprep.subr.mxu0 0.0
        %1051 = vmatpush1.msra.mxu0 0.0
        %1052 = vmatprep.subr.mxu0 0.0
        %1053 = vmatpush1.msra.mxu0 0.0
        %1054 = vmatprep.subr.mxu0 0.0
        %1055 = vmatpush1.msra.mxu0 0.0
        %1056 = vmatprep.subr.mxu0 0.0
        %1057 = vmatpush1.msra.mxu0 0.0
        %1058 = vmatprep.subr.mxu0 0.0
        %1059 = vmatpush1.msra.mxu0 0.0
        %1060 = vmatprep.subr.mxu0 0.0
        %1061 = vmatpush1.msra.mxu0 0.0
        %1062 = vmatprep.subr.mxu0 0.0
        %1063 = vmatpush1.msra.mxu0 0.0
        %1064 = vmatprep.subr.mxu0 0.0
        %1065 = vmatpush1.msra.mxu0 0.0
        %1066 = vmatprep.subr.mxu0 0.0
        %1067 = vmatpush1.msra.mxu0 0.0
        %1068 = vmatprep.subr.mxu0 0.0
        %1069 = vmatpush1.msra.mxu0 0.0
        %1070 = vmatprep.subr.mxu0 0.0
        %1071 = vmatpush1.msra.mxu0 0.0
        %1072 = vmatprep.subr.mxu0 0.0
        %1073 = vmatpush1.msra.mxu0 %v1040
        %1074 = vmatprep.subr.mxu0 0.0
        %1075 = vmatpush2.msra.mxu0 0.0
        %1076 = vmatprep.subr.mxu0 0.0
        %1077 = vmatpush2.msra.mxu0 0.0
        %1078 = vmatprep.subr.mxu0 0.0
        %1079 = vmatpush2.msra.mxu0 0.0
        %1080 = vmatprep.subr.mxu0 0.0
        %1081 = vmatpush2.msra.mxu0 0.0
        %1082 = vmatprep.subr.mxu0 0.0
        %1083 = vmatpush2.msra.mxu0 0.0
        %1084 = vmatprep.subr.mxu0 0.0
        %1085 = vmatpush2.msra.mxu0 0.0
        %1086 = vmatprep.subr.mxu0 0.0
        %1087 = vmatpush2.msra.mxu0 0.0
        %1088 = vmatprep.subr.mxu0 0.0
        %1089 = vmatpush2.msra.mxu0 0.0
        %1090 = vmatprep.subr.mxu0 0.0
        %1091 = vmatpush2.msra.mxu0 0.0
        %1092 = vmatprep.subr.mxu0 0.0
        %1093 = vmatpush2.msra.mxu0 0.0
        %1094 = vmatprep.subr.mxu0 0.0
        %1095 = vmatpush2.msra.mxu0 0.0
        %1096 = vmatprep.subr.mxu0 0.0
        %1097 = vmatpush2.msra.mxu0 0.0
        %1098 = vmatprep.subr.mxu0 0.0
        %1099 = vmatpush2.msra.mxu0 0.0
        %1100 = vmatprep.subr.mxu0 0.0
        %1101 = vmatpush2.msra.mxu0 0.0
        %1102 = vmatprep.subr.mxu0 0.0
        %1103 = vmatpush2.msra.mxu0 0.0
        %1104 = vmatprep.subr.mxu0 0.0
        %1105 = vmatpush2.msra.mxu0 0.0
        %1106 = vmatprep.mubr.f32.mxu0 0.0
        %1107 = vmatmul.mubr.f32.gmra.mxu0 %v1036
        %v1108 = vpop.f32.mrf.mxu0
        %v1109 = vadd.f32 %v1032, %v1108
        %v1110 = vpop.f32.mrf.mxu0
        %1111 = vdwg.mxu0
        %v1112 = vmax.f32 %v1109, 0.0
        %v1113 = vand.u32 2147483647, %v1109
        %v1114 = vsub.f32 0.0, %v1113
        %v1115 = vmul.f32 %v1114, 1.442695
        %v1116 = vpow.pop %v1115
        %v1117 = vadd.f32 %v1116, 1.0
        %v1118 = vlog2.pop %v1117
        %v1119 = vmul.f32 %v1118, 0.6931472
        %v1120 = vadd.f32 %v1112, %v1119
        %1121 = vst.msk [vmem:[#allocation4] sm:$0xff] %vm900, %v1120
        %v1122 = vld [vmem:[#allocation17] sm:$0xff]
        %v1123 = vld [vmem:[#allocation17 + $0x8] sm:$0xff]
        %v1124 = vld [vmem:[%s14] sm:$0x1]
        %v1125 = vld [vmem:[%s10] sm:$0xf]
        %v1126 = vld [vmem:[%s10 + $0x4] sm:$0xf]
        %v1127 = vld [vmem:[%s10 + $0x8] sm:$0xf]
        %v1128 = vld [vmem:[%s10 + $0xc] sm:$0xf]
        %v1129 = vld [vmem:[#allocation4] sm:$0xff]
        %v1130 = vld [vmem:[#allocation3] sm:$0xff]
        %v1131 = vpack.c.bf16 %v1130, %v1130
        %v1136 = vunpack.c.l.b16 %v1125
        %v1137 = vunpack.c.l.b16 %v1126
        %v1138 = vunpack.c.l.b16 %v1127
        %v1139 = vunpack.c.l.b16 %v1128
        %v1140 = vpack.c.b16 %v1137, %v1136
        %v1141 = vpack.c.b16 %v1139, %v1138
        %v1143 = vsel %vm900, %v1140, 0
        %v1146 = vsel %vm900, %v1141, 0
        %v1149 = vsel %vm900, %v1131, 0
        %1151 = vmatprep.subr.bf16.mxu0 0
        %1152 = vmatpush1.bf16.xpose.msra.mxu0 0
        %1153 = vmatprep.subr.bf16.mxu0 0
        %1154 = vmatpush1.bf16.xpose.msra.mxu0 0
        %1155 = vmatprep.subr.bf16.mxu0 0
        %1156 = vmatpush1.bf16.xpose.msra.mxu0 0
        %1157 = vmatprep.subr.bf16.mxu0 0
        %1158 = vmatpush1.bf16.xpose.msra.mxu0 0
        %1159 = vmatprep.subr.bf16.mxu0 0
        %1160 = vmatpush1.bf16.xpose.msra.mxu0 0
        %1161 = vmatprep.subr.bf16.mxu0 0
        %1162 = vmatpush1.bf16.xpose.msra.mxu0 0
        %1163 = vmatprep.subr.bf16.mxu0 0
        %1164 = vmatpush1.bf16.xpose.msra.mxu0 0
        %1165 = vmatprep.subr.bf16.mxu0 0
        %1166 = vmatpush1.bf16.xpose.msra.mxu0 %v1149
        %1167 = vmatprep.subr.bf16.mxu0 0
        %1168 = vmatpush2.bf16.xpose.msra.mxu0 0
        %1169 = vmatprep.subr.bf16.mxu0 0
        %1170 = vmatpush2.bf16.xpose.msra.mxu0 0
        %1171 = vmatprep.subr.bf16.mxu0 0
        %1172 = vmatpush2.bf16.xpose.msra.mxu0 0
        %1173 = vmatprep.subr.bf16.mxu0 0
        %1174 = vmatpush2.bf16.xpose.msra.mxu0 0
        %1175 = vmatprep.subr.bf16.mxu0 0
        %1176 = vmatpush2.bf16.xpose.msra.mxu0 0
        %1177 = vmatprep.subr.bf16.mxu0 0
        %1178 = vmatpush2.bf16.xpose.msra.mxu0 0
        %1179 = vmatprep.subr.bf16.mxu0 0
        %1180 = vmatpush2.bf16.xpose.msra.mxu0 0
        %1181 = vmatprep.subr.bf16.mxu0 0
        %1182 = vmatpush2.bf16.xpose.msra.mxu0 0
        %1183 = vmatprep.mubr.bf16.mxu0 0
        %1184 = vmatmul.mubr.bf16.gmra.mxu0 %v1143
        %v1185 = vpop.f32.mrf.mxu0
        %v1186 = vadd.f32 0.0, %v1185
        %v1187 = vpop.f32.mrf.mxu0
        %v1188 = vpop.f32.mrf.mxu0
        %v1189 = vadd.f32 0.0, %v1188
        %v1190 = vpop.f32.mrf.mxu0
        %1191 = vmatprep.mubr.bf16.mxu0 0
        %1192 = vmatmul.mubr.bf16.gmra.mxu0 %v1146
        %v1193 = vpop.f32.mrf.mxu0
        %v1194 = vadd.f32 0.0, %v1193
        %v1195 = vpop.f32.mrf.mxu0
        %v1196 = vpop.f32.mrf.mxu0
        %v1197 = vadd.f32 0.0, %v1196
        %v1198 = vpop.f32.mrf.mxu0
        %1199 = vdwg.mxu0
        %v1200 = vmul.f32 %v1129, %v1130
        %v1201 = vlaneseq
        %v1202 = vshrl.u32 %v1201, 7
        %v1203 = vsub.s32 0, %v1202
        %v1204 = vrot.slane %v1129, %v1203
        %v1205 = vmul.f32 %v1204, %v1122
        %v1206 = vmul.f32 %v1204, %v1123
        %v1207 = vmul.f32 %v1205, 1.442695
        %v1208 = vpow.pop %v1207
        %v1209 = vmul.f32 %v1206, 1.442695
        %v1210 = vpow.pop %v1209
        %v1211 = vlaneseq
        %v1212 = vshrl.u32 %v1211, 7
        %v1213 = vsub.s32 0, %v1212
        %v1214 = vrot.slane %v1200, %v1213
        %1216 = vset.pattern.permute.xlu0 0
        %1217 = vperm.xlu0 %1216, %v1186
        %v1218 = vpop.permute.xlu0 %1217
        %1221 = vset.pattern.permute.xlu0 0
        %1222 = vperm.xlu0 %1221, %v1189
        %v1223 = vpop.permute.xlu0 %1222
        %v1225 = vmul.f32 %v1214, %v1218
        %v1226 = vmul.f32 %v1214, %v1223
        %v1227 = vlaneseq
        %v1228 = vshrl.u32 %v1227, 7
        %v1229 = vsub.s32 1, %v1228
        %v1230 = vrot.slane %v1129, %v1229
        %v1231 = vmul.f32 %v1230, %v1122
        %v1232 = vmul.f32 %v1230, %v1123
        %v1233 = vmul.f32 %v1231, 1.442695
        %v1234 = vpow.pop %v1233
        %v1235 = vmul.f32 %v1232, 1.442695
        %v1236 = vpow.pop %v1235
        %v1237 = vlaneseq
        %v1238 = vshrl.u32 %v1237, 7
        %v1239 = vsub.s32 1, %v1238
        %v1240 = vrot.slane %v1200, %v1239
        %1241 = vset.pattern.permute.xlu0 1
        %1242 = vperm.xlu0 %1241, %v1186
        %v1243 = vpop.permute.xlu0 %1242
        %1245 = vset.pattern.permute.xlu0 1
        %1246 = vperm.xlu0 %1245, %v1189
        %v1247 = vpop.permute.xlu0 %1246
        %v1249 = vmul.f32 %v1240, %v1243
        %v1250 = vmul.f32 %v1240, %v1247
        %v1251 = vlaneseq
        %v1252 = vshrl.u32 %v1251, 7
        %v1253 = vsub.s32 2, %v1252
        %v1254 = vrot.slane %v1129, %v1253
        %v1255 = vmul.f32 %v1254, %v1122
        %v1256 = vmul.f32 %v1254, %v1123
        %v1257 = vmul.f32 %v1255, 1.442695
        %v1258 = vpow.pop %v1257
        %v1259 = vmul.f32 %v1256, 1.442695
        %v1260 = vpow.pop %v1259
        %v1261 = vlaneseq
        %v1262 = vshrl.u32 %v1261, 7
        %v1263 = vsub.s32 2, %v1262
        %v1264 = vrot.slane %v1200, %v1263
        %1265 = vset.pattern.permute.xlu0 2
        %1266 = vperm.xlu0 %1265, %v1186
        %v1267 = vpop.permute.xlu0 %1266
        %1269 = vset.pattern.permute.xlu0 2
        %1270 = vperm.xlu0 %1269, %v1189
        %v1271 = vpop.permute.xlu0 %1270
        %v1273 = vmul.f32 %v1264, %v1267
        %v1274 = vmul.f32 %v1264, %v1271
        %v1275 = vlaneseq
        %v1276 = vshrl.u32 %v1275, 7
        %v1277 = vsub.s32 3, %v1276
        %v1278 = vrot.slane %v1129, %v1277
        %v1279 = vmul.f32 %v1278, %v1122
        %v1280 = vmul.f32 %v1278, %v1123
        %v1281 = vmul.f32 %v1279, 1.442695
        %v1282 = vpow.pop %v1281
        %v1283 = vmul.f32 %v1280, 1.442695
        %v1284 = vpow.pop %v1283
        %v1285 = vlaneseq
        %v1286 = vshrl.u32 %v1285, 7
        %v1287 = vsub.s32 3, %v1286
        %v1288 = vrot.slane %v1200, %v1287
        %1289 = vset.pattern.permute.xlu0 3
        %1290 = vperm.xlu0 %1289, %v1186
        %v1291 = vpop.permute.xlu0 %1290
        %1293 = vset.pattern.permute.xlu0 3
        %1294 = vperm.xlu0 %1293, %v1189
        %v1295 = vpop.permute.xlu0 %1294
        %v1297 = vmul.f32 %v1288, %v1291
        %v1298 = vmul.f32 %v1288, %v1295
        %v1299 = vlaneseq
        %v1300 = vshrl.u32 %v1299, 7
        %v1301 = vsub.s32 4, %v1300
        %v1302 = vrot.slane %v1129, %v1301
        %v1303 = vmul.f32 %v1302, %v1122
        %v1304 = vmul.f32 %v1302, %v1123
        %v1305 = vmul.f32 %v1303, 1.442695
        %v1306 = vpow.pop %v1305
        %v1307 = vmul.f32 %v1304, 1.442695
        %v1308 = vpow.pop %v1307
        %v1309 = vlaneseq
        %v1310 = vshrl.u32 %v1309, 7
        %v1311 = vsub.s32 4, %v1310
        %v1312 = vrot.slane %v1200, %v1311
        %1313 = vset.pattern.permute.xlu0 4
        %1314 = vperm.xlu0 %1313, %v1186
        %v1315 = vpop.permute.xlu0 %1314
        %1317 = vset.pattern.permute.xlu0 4
        %1318 = vperm.xlu0 %1317, %v1189
        %v1319 = vpop.permute.xlu0 %1318
        %v1321 = vmul.f32 %v1312, %v1315
        %v1322 = vmul.f32 %v1312, %v1319
        %v1323 = vlaneseq
        %v1324 = vshrl.u32 %v1323, 7
        %v1325 = vsub.s32 5, %v1324
        %v1326 = vrot.slane %v1129, %v1325
        %v1327 = vmul.f32 %v1326, %v1122
        %v1328 = vmul.f32 %v1326, %v1123
        %v1329 = vmul.f32 %v1327, 1.442695
        %v1330 = vpow.pop %v1329
        %v1331 = vmul.f32 %v1328, 1.442695
        %v1332 = vpow.pop %v1331
        %v1333 = vlaneseq
        %v1334 = vshrl.u32 %v1333, 7
        %v1335 = vsub.s32 5, %v1334
        %v1336 = vrot.slane %v1200, %v1335
        %1337 = vset.pattern.permute.xlu0 5
        %1338 = vperm.xlu0 %1337, %v1186
        %v1339 = vpop.permute.xlu0 %1338
        %1341 = vset.pattern.permute.xlu0 5
        %1342 = vperm.xlu0 %1341, %v1189
        %v1343 = vpop.permute.xlu0 %1342
        %v1345 = vmul.f32 %v1336, %v1339
        %v1346 = vmul.f32 %v1336, %v1343
        %v1347 = vlaneseq
        %v1348 = vshrl.u32 %v1347, 7
        %v1349 = vsub.s32 6, %v1348
        %v1350 = vrot.slane %v1129, %v1349
        %v1351 = vmul.f32 %v1350, %v1122
        %v1352 = vmul.f32 %v1350, %v1123
        %v1353 = vmul.f32 %v1351, 1.442695
        %v1354 = vpow.pop %v1353
        %v1355 = vmul.f32 %v1352, 1.442695
        %v1356 = vpow.pop %v1355
        %v1357 = vlaneseq
        %v1358 = vshrl.u32 %v1357, 7
        %v1359 = vsub.s32 6, %v1358
        %v1360 = vrot.slane %v1200, %v1359
        %1361 = vset.pattern.permute.xlu0 6
        %1362 = vperm.xlu0 %1361, %v1186
        %v1363 = vpop.permute.xlu0 %1362
        %1365 = vset.pattern.permute.xlu0 6
        %1366 = vperm.xlu0 %1365, %v1189
        %v1367 = vpop.permute.xlu0 %1366
        %v1369 = vmul.f32 %v1360, %v1363
        %v1370 = vmul.f32 %v1360, %v1367
        %v1371 = vlaneseq
        %v1372 = vshrl.u32 %v1371, 7
        %v1373 = vsub.s32 7, %v1372
        %v1374 = vrot.slane %v1129, %v1373
        %v1375 = vmul.f32 %v1374, %v1122
        %v1376 = vmul.f32 %v1374, %v1123
        %v1377 = vmul.f32 %v1375, 1.442695
        %v1378 = vpow.pop %v1377
        %v1379 = vmul.f32 %v1376, 1.442695
        %v1380 = vpow.pop %v1379
        %v1381 = vlaneseq
        %v1382 = vshrl.u32 %v1381, 7
        %v1383 = vsub.s32 7, %v1382
        %v1384 = vrot.slane %v1200, %v1383
        %1385 = vset.pattern.permute.xlu0 7
        %1386 = vperm.xlu0 %1385, %v1186
        %v1387 = vpop.permute.xlu0 %1386
        %1389 = vset.pattern.permute.xlu0 7
        %1390 = vperm.xlu0 %1389, %v1189
        %v1391 = vpop.permute.xlu0 %1390
        %v1393 = vmul.f32 %v1384, %v1387
        %v1394 = vmul.f32 %v1384, %v1391
        %v1395 = vld [vmem:[#allocation7] sm:$0xff]
        %v1396 = vld [vmem:[#allocation7 + $0x8] sm:$0xff]
        %v1397 = vmul.f32 %v1208, %v1395
        %v1398 = vmul.f32 %v1210, %v1396
        %v1399 = vadd.f32 %v1397, %v1225
        %v1400 = vadd.f32 %v1398, %v1226
        %v1401 = vmul.f32 %v1234, %v1399
        %v1402 = vmul.f32 %v1236, %v1400
        %v1403 = vadd.f32 %v1401, %v1249
        %v1404 = vadd.f32 %v1402, %v1250
        %v1405 = vmul.f32 %v1258, %v1403
        %v1406 = vmul.f32 %v1260, %v1404
        %v1407 = vadd.f32 %v1405, %v1273
        %v1408 = vadd.f32 %v1406, %v1274
        %v1409 = vmul.f32 %v1282, %v1407
        %v1410 = vmul.f32 %v1284, %v1408
        %v1411 = vadd.f32 %v1409, %v1297
        %v1412 = vadd.f32 %v1410, %v1298
        %v1413 = vmul.f32 %v1306, %v1411
        %v1414 = vmul.f32 %v1308, %v1412
        %v1415 = vadd.f32 %v1413, %v1321
        %v1416 = vadd.f32 %v1414, %v1322
        %v1417 = vmul.f32 %v1330, %v1415
        %v1418 = vmul.f32 %v1332, %v1416
        %v1419 = vadd.f32 %v1417, %v1345
        %v1420 = vadd.f32 %v1418, %v1346
        %v1421 = vmul.f32 %v1354, %v1419
        %v1422 = vmul.f32 %v1356, %v1420
        %v1423 = vadd.f32 %v1421, %v1369
        %v1424 = vadd.f32 %v1422, %v1370
        %v1425 = vmul.f32 %v1378, %v1423
        %v1426 = vmul.f32 %v1380, %v1424
        %v1427 = vadd.f32 %v1425, %v1393
        %v1428 = vadd.f32 %v1426, %v1394
        %1429 = vst.msk [vmem:[#allocation7] sm:$0xff] %vm900, %v1427
        %1430 = vst.msk [vmem:[#allocation7 + $0x8] sm:$0xff] %vm900, %v1428
        %1432 = vset.pattern.permute.xlu0 0
        %1433 = vperm.xlu0 %1432, %v1194
        %v1434 = vpop.permute.xlu0 %1433
        %1437 = vset.pattern.permute.xlu0 0
        %1438 = vperm.xlu0 %1437, %v1197
        %v1439 = vpop.permute.xlu0 %1438
        %v1441 = vmul.f32 %v1399, %v1434
        %v1442 = vmul.f32 %v1400, %v1439
        %v1443 = vsel %vm900, %v1441, 0.0
        %v1444 = vsel %vm900, %v1442, 0.0
        %v1445 = vadd.f32 %v1443, %v1444
        %v1446 = vrot.slane %v1445, 4
        %v1447 = vadd.f32 %v1445, %v1446
        %v1448 = vrot.slane %v1447, 2
        %v1449 = vadd.f32 %v1447, %v1448
        %v1450 = vrot.slane %v1449, 1
        %v1451 = vadd.f32 %v1449, %v1450
        %1452 = vset.pattern.permute.xlu0 1
        %1453 = vperm.xlu0 %1452, %v1194
        %v1454 = vpop.permute.xlu0 %1453
        %1456 = vset.pattern.permute.xlu0 1
        %1457 = vperm.xlu0 %1456, %v1197
        %v1458 = vpop.permute.xlu0 %1457
        %v1460 = vmul.f32 %v1403, %v1454
        %v1461 = vmul.f32 %v1404, %v1458
        %v1462 = vsel %vm900, %v1460, 0.0
        %v1463 = vsel %vm900, %v1461, 0.0
        %v1464 = vadd.f32 %v1462, %v1463
        %v1465 = vrot.slane %v1464, 4
        %v1466 = vadd.f32 %v1464, %v1465
        %v1467 = vrot.slane %v1466, 2
        %v1468 = vadd.f32 %v1466, %v1467
        %v1469 = vrot.slane %v1468, 1
        %v1470 = vadd.f32 %v1468, %v1469
        %1471 = vset.pattern.permute.xlu0 2
        %1472 = vperm.xlu0 %1471, %v1194
        %v1473 = vpop.permute.xlu0 %1472
        %1475 = vset.pattern.permute.xlu0 2
        %1476 = vperm.xlu0 %1475, %v1197
        %v1477 = vpop.permute.xlu0 %1476
        %v1479 = vmul.f32 %v1407, %v1473
        %v1480 = vmul.f32 %v1408, %v1477
        %v1481 = vsel %vm900, %v1479, 0.0
        %v1482 = vsel %vm900, %v1480, 0.0
        %v1483 = vadd.f32 %v1481, %v1482
        %v1484 = vrot.slane %v1483, 4
        %v1485 = vadd.f32 %v1483, %v1484
        %v1486 = vrot.slane %v1485, 2
        %v1487 = vadd.f32 %v1485, %v1486
        %v1488 = vrot.slane %v1487, 1
        %v1489 = vadd.f32 %v1487, %v1488
        %1490 = vset.pattern.permute.xlu0 3
        %1491 = vperm.xlu0 %1490, %v1194
        %v1492 = vpop.permute.xlu0 %1491
        %1494 = vset.pattern.permute.xlu0 3
        %1495 = vperm.xlu0 %1494, %v1197
        %v1496 = vpop.permute.xlu0 %1495
        %v1498 = vmul.f32 %v1411, %v1492
        %v1499 = vmul.f32 %v1412, %v1496
        %v1500 = vsel %vm900, %v1498, 0.0
        %v1501 = vsel %vm900, %v1499, 0.0
        %v1502 = vadd.f32 %v1500, %v1501
        %v1503 = vrot.slane %v1502, 4
        %v1504 = vadd.f32 %v1502, %v1503
        %v1505 = vrot.slane %v1504, 2
        %v1506 = vadd.f32 %v1504, %v1505
        %v1507 = vrot.slane %v1506, 1
        %v1508 = vadd.f32 %v1506, %v1507
        %1509 = vset.pattern.permute.xlu0 4
        %1510 = vperm.xlu0 %1509, %v1194
        %v1511 = vpop.permute.xlu0 %1510
        %1513 = vset.pattern.permute.xlu0 4
        %1514 = vperm.xlu0 %1513, %v1197
        %v1515 = vpop.permute.xlu0 %1514
        %v1517 = vmul.f32 %v1415, %v1511
        %v1518 = vmul.f32 %v1416, %v1515
        %v1519 = vsel %vm900, %v1517, 0.0
        %v1520 = vsel %vm900, %v1518, 0.0
        %v1521 = vadd.f32 %v1519, %v1520
        %v1522 = vrot.slane %v1521, 4
        %v1523 = vadd.f32 %v1521, %v1522
        %v1524 = vrot.slane %v1523, 2
        %v1525 = vadd.f32 %v1523, %v1524
        %v1526 = vrot.slane %v1525, 1
        %v1527 = vadd.f32 %v1525, %v1526
        %1528 = vset.pattern.permute.xlu0 5
        %1529 = vperm.xlu0 %1528, %v1194
        %v1530 = vpop.permute.xlu0 %1529
        %1532 = vset.pattern.permute.xlu0 5
        %1533 = vperm.xlu0 %1532, %v1197
        %v1534 = vpop.permute.xlu0 %1533
        %v1536 = vmul.f32 %v1419, %v1530
        %v1537 = vmul.f32 %v1420, %v1534
        %v1538 = vsel %vm900, %v1536, 0.0
        %v1539 = vsel %vm900, %v1537, 0.0
        %v1540 = vadd.f32 %v1538, %v1539
        %v1541 = vrot.slane %v1540, 4
        %v1542 = vadd.f32 %v1540, %v1541
        %v1543 = vrot.slane %v1542, 2
        %v1544 = vadd.f32 %v1542, %v1543
        %v1545 = vrot.slane %v1544, 1
        %v1546 = vadd.f32 %v1544, %v1545
        %1547 = vset.pattern.permute.xlu0 6
        %1548 = vperm.xlu0 %1547, %v1194
        %v1549 = vpop.permute.xlu0 %1548
        %1551 = vset.pattern.permute.xlu0 6
        %1552 = vperm.xlu0 %1551, %v1197
        %v1553 = vpop.permute.xlu0 %1552
        %v1555 = vmul.f32 %v1423, %v1549
        %v1556 = vmul.f32 %v1424, %v1553
        %v1557 = vsel %vm900, %v1555, 0.0
        %v1558 = vsel %vm900, %v1556, 0.0
        %v1559 = vadd.f32 %v1557, %v1558
        %v1560 = vrot.slane %v1559, 4
        %v1561 = vadd.f32 %v1559, %v1560
        %v1562 = vrot.slane %v1561, 2
        %v1563 = vadd.f32 %v1561, %v1562
        %v1564 = vrot.slane %v1563, 1
        %v1565 = vadd.f32 %v1563, %v1564
        %1566 = vset.pattern.permute.xlu0 7
        %1567 = vperm.xlu0 %1566, %v1194
        %v1568 = vpop.permute.xlu0 %1567
        %1570 = vset.pattern.permute.xlu0 7
        %1571 = vperm.xlu0 %1570, %v1197
        %v1572 = vpop.permute.xlu0 %1571
        %v1574 = vmul.f32 %v1427, %v1568
        %v1575 = vmul.f32 %v1428, %v1572
        %v1576 = vsel %vm900, %v1574, 0.0
        %v1577 = vsel %vm900, %v1575, 0.0
        %v1578 = vadd.f32 %v1576, %v1577
        %v1579 = vrot.slane %v1578, 4
        %v1580 = vadd.f32 %v1578, %v1579
        %v1581 = vrot.slane %v1580, 2
        %v1582 = vadd.f32 %v1580, %v1581
        %v1583 = vrot.slane %v1582, 1
        %v1584 = vadd.f32 %v1582, %v1583
        %vm1585 = vcmask 1040384
        %v1586 = vsel %vm1585, %v1451, %v1470
        %v1587 = vsel %vm1038, %v1586, %v1489
        %vm1588 = vcmask 1042432
        %v1589 = vsel %vm1588, %v1587, %v1508
        %vm1590 = vcmask 1043456
        %v1591 = vsel %vm1590, %v1589, %v1527
        %vm1592 = vcmask 1044480
        %v1593 = vsel %vm1592, %v1591, %v1546
        %vm1594 = vcmask 1045504
        %v1595 = vsel %vm1594, %v1593, %v1565
        %vm1596 = vcmask 1046528
        %v1597 = vsel %vm1596, %v1595, %v1584
        %v1599 = vlaneseq
        %v1600 = vshrl.u32 %v1599, 7
        %v1601 = vsub.s32 0, %v1600
        %v1602 = vrot.slane %v1124, %v1601
        %v1604 = vmul.f32 %v1602, %v1130
        %v1605 = vadd.f32 %v1597, %v1604
        %1606 = vst.msk [vmem:[#allocation6] sm:$0xff] %vm900, %v1605
        %v1607 = vld [vmem:[#allocation7] sm:$0xff]
        %v1608 = vld [vmem:[#allocation7 + $0x8] sm:$0xff]
        %1609 = vst.msk [vmem:[%s711] sm:$0xff] %vm900, %v1607
        %1610 = vst.msk [vmem:[%s711 + $0x8] sm:$0xff] %vm900, %v1608
        %v1611 = vld [vmem:[#allocation6] sm:$0xff]
        %v1612 = vld [vmem:[#allocation5] sm:$0xf]
        %v1613 = vunpack.c.l.bf16 %v1612
        %v1614 = vsub.f32 0.0, %v1613
        %v1615 = vmul.f32 %v1614, 1.442695
        %v1616 = vpow.pop %v1615
        %v1617 = vadd.f32 %v1616, 1.0
        %v1618 = vrcp.pop %v1617
        %v1619 = vmul.f32 %v1613, %v1618
        %v1620 = vmul.f32 %v1611, %v1619
        %v1621 = vpack.c.bf16 %v1620, %v1620
        %v1622 = vld [vmem:[%s15] sm:$0xf]
        %v1623 = vld [vmem:[%s15 + $0x4] sm:$0xf]
        %v1624 = vld [vmem:[%s15 + $0x8] sm:$0xf]
        %v1625 = vld [vmem:[%s15 + $0xc] sm:$0xf]
        %v1626 = vld [vmem:[%s15 + $0x10] sm:$0xf]
        %v1627 = vld [vmem:[%s15 + $0x14] sm:$0xf]
        %v1628 = vld [vmem:[%s15 + $0x18] sm:$0xf]
        %v1629 = vld [vmem:[%s15 + $0x1c] sm:$0xf]
        %v1638 = vunpack.c.l.b16 %v1622
        %v1639 = vunpack.c.l.b16 %v1623
        %v1640 = vunpack.c.l.b16 %v1624
        %v1641 = vunpack.c.l.b16 %v1625
        %v1642 = vunpack.c.l.b16 %v1626
        %v1643 = vunpack.c.l.b16 %v1627
        %v1644 = vunpack.c.l.b16 %v1628
        %v1645 = vunpack.c.l.b16 %v1629
        %v1646 = vpack.c.b16 %v1639, %v1638
        %v1647 = vpack.c.b16 %v1641, %v1640
        %v1648 = vpack.c.b16 %v1643, %v1642
        %v1649 = vpack.c.b16 %v1645, %v1644
        %v1655 = vsel %vm900, %v1621, 0
        %1657 = vmatprep.subr.bf16.mxu0 0
        %1658 = vmatpush1.bf16.msra.mxu0 0
        %1659 = vmatprep.subr.bf16.mxu0 0
        %1660 = vmatpush1.bf16.msra.mxu0 0
        %1661 = vmatprep.subr.bf16.mxu0 0
        %1662 = vmatpush1.bf16.msra.mxu0 0
        %1663 = vmatprep.subr.bf16.mxu0 0
        %1664 = vmatpush1.bf16.msra.mxu0 0
        %1665 = vmatprep.subr.bf16.mxu0 0
        %1666 = vmatpush1.bf16.msra.mxu0 %v1649
        %1667 = vmatprep.subr.bf16.mxu0 0
        %1668 = vmatpush1.bf16.msra.mxu0 %v1648
        %1669 = vmatprep.subr.bf16.mxu0 0
        %1670 = vmatpush1.bf16.msra.mxu0 %v1647
        %1671 = vmatprep.subr.bf16.mxu0 0
        %1672 = vmatpush1.bf16.msra.mxu0 %v1646
        %1673 = vmatprep.subr.bf16.mxu0 0
        %1674 = vmatpush2.bf16.msra.mxu0 0
        %1675 = vmatprep.subr.bf16.mxu0 0
        %1676 = vmatpush2.bf16.msra.mxu0 0
        %1677 = vmatprep.subr.bf16.mxu0 0
        %1678 = vmatpush2.bf16.msra.mxu0 0
        %1679 = vmatprep.subr.bf16.mxu0 0
        %1680 = vmatpush2.bf16.msra.mxu0 0
        %1681 = vmatprep.subr.bf16.mxu0 0
        %1682 = vmatpush2.bf16.msra.mxu0 0
        %1683 = vmatprep.subr.bf16.mxu0 0
        %1684 = vmatpush2.bf16.msra.mxu0 0
        %1685 = vmatprep.subr.bf16.mxu0 0
        %1686 = vmatpush2.bf16.msra.mxu0 0
        %1687 = vmatprep.subr.bf16.mxu0 0
        %1688 = vmatpush2.bf16.msra.mxu0 0
        %1689 = vmatprep.mubr.bf16.mxu0 0
        %1690 = vmatmul.mubr.bf16.gmra.mxu0 %v1655
        %v1691 = vpop.f32.mrf.mxu0
        %v1692 = vadd.f32 0.0, %v1691
        %v1693 = vpop.f32.mrf.mxu0
        %v1694 = vpop.f32.mrf.mxu0
        %v1695 = vpop.f32.mrf.mxu0
        %1696 = vdwg.mxu0
        %1697 = vst.msk [vmem:[%s697] sm:$0xff] %vm735, %v1692
        %s1698 = sand.u32 %s416, 1
        %s1699 = scalar_lea.sflag [#allocation11], %s1698
        %s1700 = sand.u32 %s416, 1
        %s1701 = smul.addr %s1700, 8
        %s1702 = scalar_lea.vmem [#allocation18], %s1701
        %s1703 = sand.u32 %s39, 1
        %s1704 = scalar_lea.sflag [#allocation20], %s1703
        %s1705 = sand.u32 %s444, 1
        %s1706 = smul.addr %s1705, 8
        %s1707 = scalar_lea.vmem [#allocation19], %s1706
        %s1708 = sand.u32 %s39, 1
        %s1709 = scalar_lea.sflag [#allocation20], %s1708
        %s1710 = sand.u32 %s470, 1
        %s1711 = smul.addr %s1710, 16
        %s1712 = scalar_lea.vmem [#allocation21], %s1711
        // Predicated region
        $region109: #{tpu_custom_call.1} parent=83 // pred_check
          %p1713 = pneg %p426
        $region110: #{tpu_custom_call.1} parent=83 // pred_check_branch
          %1715 = sbr.rel (%p1713) target = $region112
        $region111: #{tpu_custom_call.1} parent=83 // pred_region
          %s1717 = ssub.s32 128, 128
          %1718 = vsyncadd %s1699, %s1717
          %s1719 = sadd.s32 %s44, %s43
          %s1720 = smul.addr %s1719, 128
          %s1721 = scalar_lea.hbm %s16, %s1720
          %s1723 = sshll.u32 %s1702, 4
          %s1724 = int_to_ptr.vmem [resolvable:$true] %s1723
          %1726 = dma.vmem_to_hbm [thread:$0]  %s1724, 128, %s1721, %s1699
        $region112: #{tpu_custom_call.1} parent=83 // pred_fallthru
          _
        // Predicated region
        $region113: #{tpu_custom_call.1} parent=83 // pred_check
          %p1727 = pneg %p454
        $region114: #{tpu_custom_call.1} parent=83 // pred_check_branch
          %1729 = sbr.rel (%p1727) target = $region116
        $region115: #{tpu_custom_call.1} parent=83 // pred_region
          %s1731 = ssub.s32 128, 128
          %1732 = vsyncadd %s1704, %s1731
          %s1733 = sadd.s32 %s44, %s43
          %s1734 = smul.addr %s1733, 128
          %s1735 = scalar_lea.hbm %s17, %s1734
          %s1737 = sshll.u32 %s1707, 4
          %s1738 = int_to_ptr.vmem [resolvable:$true] %s1737
          %1740 = dma.vmem_to_hbm [thread:$0]  %s1738, 128, %s1735, %s1704
        $region116: #{tpu_custom_call.1} parent=83 // pred_fallthru
          _
        // Predicated region
        $region117: #{tpu_custom_call.1} parent=83 // pred_check
          %p1741 = pneg %p480
        $region118: #{tpu_custom_call.1} parent=83 // pred_check_branch
          %1743 = sbr.rel (%p1741) target = $region120
        $region119: #{tpu_custom_call.1} parent=83 // pred_region
          %s1745 = ssub.s32 256, 256
          %1746 = vsyncadd %s1709, %s1745
          %s1747 = smul.addr %s43, 2
          %s1748 = smul.addr %s1747, 128
          %s1749 = scalar_lea.hbm %s18, %s1748
          %s1750 = sshll.u32 %s1712, 4
          %s1751 = int_to_ptr.vmem [resolvable:$true] %s1750
          %1756 = dma.vmem_to_hbm [thread:$0]  %s1751, 256, %s1749, %s1709, 128, 128, 8
        $region120: #{tpu_custom_call.1} parent=83 // pred_fallthru
          _
      $region84: #{tpu_custom_call.1} parent=5 // pred_fallthru
        _
      %p1757 = scmp.le.s32.totalorder 2, %s34
      // Predicated region
      $region121: #{tpu_custom_call.1} parent=5 // pred_check
        %p1758 = pneg %p1757
      $region122: #{tpu_custom_call.1} parent=5 // pred_check_branch
        %1760 = sbr.rel (%p1758) target = $region124
      $region123: #{tpu_custom_call.1} parent=5 // pred_region
        %s1761 = ssub.s32 %s34, 2
        // Predicated region
        $region125: #{tpu_custom_call.1} parent=123 // pred_check
          %p1762 = pneg %p432
        $region126: #{tpu_custom_call.1} parent=123 // pred_check_branch
          %1764 = sbr.rel (%p1762) target = $region128
        $region127: #{tpu_custom_call.1} parent=123 // pred_region
          %s1765 = sand.u32 %s417, 1
          %s1766 = scalar_lea.sflag [#allocation11], %s1765
          %s1767 = sand.u32 %s417, 1
          %s1768 = smul.addr %s1767, 8
          %s1769 = scalar_lea.vmem [#allocation18], %s1768
          %1770 = dma.done %s1766, 128
        $region128: #{tpu_custom_call.1} parent=123 // pred_fallthru
          _
        // Predicated region
        $region129: #{tpu_custom_call.1} parent=123 // pred_check
          %p1771 = pneg %p460
        $region130: #{tpu_custom_call.1} parent=123 // pred_check_branch
          %1773 = sbr.rel (%p1771) target = $region132
        $region131: #{tpu_custom_call.1} parent=123 // pred_region
          %s1774 = sand.u32 %s40, 1
          %s1775 = scalar_lea.sflag [#allocation20], %s1774
          %s1776 = sand.u32 %s445, 1
          %s1777 = smul.addr %s1776, 8
          %s1778 = scalar_lea.vmem [#allocation19], %s1777
          %1779 = dma.done %s1775, 128
        $region132: #{tpu_custom_call.1} parent=123 // pred_fallthru
          _
        // Predicated region
        $region133: #{tpu_custom_call.1} parent=123 // pred_check
          %p1780 = pneg %p486
        $region134: #{tpu_custom_call.1} parent=123 // pred_check_branch
          %1782 = sbr.rel (%p1780) target = $region136
        $region135: #{tpu_custom_call.1} parent=123 // pred_region
          %s1783 = sand.u32 %s40, 1
          %s1784 = scalar_lea.sflag [#allocation20], %s1783
          %s1785 = sand.u32 %s471, 1
          %s1786 = smul.addr %s1785, 16
          %s1787 = scalar_lea.vmem [#allocation21], %s1786
          %1788 = dma.done %s1784, 256
        $region136: #{tpu_custom_call.1} parent=123 // pred_fallthru
          _
      $region124: #{tpu_custom_call.1} parent=5 // pred_fallthru
        _
    $region6: #{tpu_custom_call.1} parent=1 // loop_footer
      %s38 = sadd.s32 1, %s34
    $region7: #{tpu_custom_call.1} parent=1 // loop_footer_branch
      %33 = sbr.rel target = $region3
    $region8: #{tpu_custom_call.1} parent=1 // loop_exit
      _
    %1789 = vsyncpa [#allocation10], 1
    %s1790 = scalar_lea.sflag [#allocation10], 1
    %1791 = vsyncpa %s1790, 1
    %1792 = vsyncpa [#allocation13], 1
    %1793 = vsyncpa [#allocation16], 1
    %1794 = vsyncpa [#allocation11], 1
    %s1795 = scalar_lea.sflag [#allocation11], 1
    %1796 = vsyncpa %s1795, 1
    %1797 = vsyncpa [#allocation20], 1
    %s1798 = scalar_lea.sflag [#allocation20], 1
    %1799 = vsyncpa %s1798, 1

</llo_original>
